<compile_context>
chip_gen: v7x
topology: tpu7x:2x2x1
jax: 0.10.0
libtpu: 0.0.40
codegen_flags: <defaults>
</compile_context>

<pallas_src>
import math
import functools

import jax
import jax.numpy as jnp
from jax.experimental import pallas as pl
from jax.experimental.pallas import tpu as pltpu

LN_EPS = 1e-5        # torch nn.LayerNorm default
NEG_BIAS = -1e9      # finite "masked" bias (avoids NaN if a row is fully masked)


def _layernorm(x, gamma, beta):
    mu = jnp.mean(x, axis=-1, keepdims=True)
    var = jnp.mean((x - mu) ** 2, axis=-1, keepdims=True)
    return (x - mu) * jax.lax.rsqrt(var + LN_EPS) * gamma + beta


# ------------------------------------------------------------------
# Fused kernel. grid = (B, num_q_tiles); q-tile axis is sequential so the
# projected K/V scratch (computed at q-tile 0) carries across tiles.
# ------------------------------------------------------------------
def mha_kernel(q_ref, k_ref, v_ref, bias_ref,
               wq_ref, bq_ref, wk_ref, bk_ref, wv_ref, bv_ref,
               wfc_ref, bfc_ref, g_ref, be_ref,
               out_ref, *rest, n_head, d_k, d_v, return_attn):
    if return_attn:
        attn_ref, kproj_scr, vproj_scr, ctx_scr = rest
    else:
        kproj_scr, vproj_scr, ctx_scr = rest

    # ---- K/V projections: once per batch element (q-tile 0). ---------------
    @pl.when(pl.program_id(1) == 0)
    def _project_kv():
        kp = jnp.dot(k_ref[0], wk_ref[...],
                     preferred_element_type=jnp.float32) + bk_ref[...]
        vp = jnp.dot(v_ref[0], wv_ref[...],
                     preferred_element_type=jnp.float32) + bv_ref[...]
        kproj_scr[...] = kp.astype(jnp.bfloat16)   # (Tk, H*d_k)
        vproj_scr[...] = vp.astype(jnp.bfloat16)   # (Tk, H*d_v)

    # ---- Q projection for this query tile (1/sqrt(d_k) folded into wq/bq). -
    xq = q_ref[0]                                  # (TQ, D) f32 -- also residual
    qp = jnp.dot(xq.astype(jnp.bfloat16), wq_ref[...],
                 preferred_element_type=jnp.float32) + bq_ref[...]   # (TQ, H*d_k)
    bias = bias_ref[0]                             # (1, Tk) additive key mask

    # ---- Per-head attention (M=TQ, N=Tk wide -> each matmul MXU-friendly). -
    for h in range(n_head):                        # static unroll, n_head small
        qh = qp[:, h * d_k:(h + 1) * d_k].astype(jnp.bfloat16)
        kh = kproj_scr[:, h * d_k:(h + 1) * d_k]
        vh = vproj_scr[:, h * d_v:(h + 1) * d_v]
        s = jnp.einsum('qd,kd->qk', qh, kh,
                       preferred_element_type=jnp.float32) + bias     # (TQ, Tk)
        m = jnp.max(s, axis=-1, keepdims=True)
        e = jnp.exp(s - m)
        denom = jnp.sum(e, axis=-1, keepdims=True)
        if return_attn:
            a = e / denom                          # exact probs for the output
            attn_ref[h, 0] = a.astype(attn_ref.dtype)
            ctx = jnp.dot(a.astype(jnp.bfloat16), vh,
                          preferred_element_type=jnp.float32)
        else:
            # Never normalize the (TQ, Tk) matrix; scale the small context.
            ctx = jnp.dot(e.astype(jnp.bfloat16), vh,
                          preferred_element_type=jnp.float32)
            ctx = ctx * pl.reciprocal(denom, approx=True)
        ctx_scr[:, h * d_v:(h + 1) * d_v] = ctx.astype(jnp.bfloat16)

    # ---- Output projection (one matmul over H*d_v), residual, LayerNorm. ---
    o = jnp.dot(ctx_scr[...], wfc_ref[...],
                preferred_element_type=jnp.float32) + bfc_ref[...]
    # Dropout(p=0.1) is identity at inference time.
    out_ref[0] = _layernorm(o + xq, g_ref[...], be_ref[...])


# ------------------------------------------------------------------
# Wrapper
# ------------------------------------------------------------------
def multi_head_attention(q, k, v, mask, p, *, n_head, d_k, d_v,
                         return_attn=True, attn_dtype=jnp.bfloat16, q_tile=256):
    """q, k, v: (B, T, d_model) f32; mask: (B, Tk) bool, True = padded key."""
    B, Tq, D = q.shape
    Tk = k.shape[1]

    tq = min(q_tile, Tq)
    if Tq % tq:
        tq = Tq                        # fallback: whole sequence in one tile
    nqt = Tq // tq

    # Head-fused bf16 matmul weights; softmax scale folded into wq / bq.
    scale = 1.0 / math.sqrt(d_k)
    wq = (p["wq"] * scale).astype(jnp.bfloat16)                  # (D, H*d_k)
    bq = (p["bq"] * scale).reshape(1, n_head * d_k).astype(jnp.float32)
    wk = p["wk"].astype(jnp.bfloat16)                            # (D, H*d_k)
    bk = p["bk"].reshape(1, n_head * d_k).astype(jnp.float32)
    wv = p["wv"].astype(jnp.bfloat16)                            # (D, H*d_v)
    bv = p["bv"].reshape(1, n_head * d_v).astype(jnp.float32)
    wfc = p["wfc"].astype(jnp.bfloat16)                          # (H*d_v, D)
    bfc = p["bfc"].reshape(1, D).astype(jnp.float32)
    g = p["g"].reshape(1, D).astype(jnp.float32)
    be = p["be"].reshape(1, D).astype(jnp.float32)

    # K/V activations in bf16 (halves their DMA); q stays f32 (residual path).
    k_bf = k.astype(jnp.bfloat16)
    v_bf = v.astype(jnp.bfloat16)

    # Additive key-mask bias, precomputed wrapper-side.
    if mask is None:
        bias = jnp.zeros((B, 1, Tk), jnp.float32)
    else:
        bias = mask.astype(jnp.float32).reshape(B, 1, Tk) * jnp.float32(NEG_BIAS)

    def full(x):
        nd = x.ndim
        # NOTE: constant-index weight blocks; pl.Buffered(1) single-buffering
        # would reclaim a little VMEM but weights here are small.
        return pl.BlockSpec(x.shape, lambda b, t, _n=nd: (0,) * _n)

    in_specs = [
        pl.BlockSpec((1, tq, D), lambda b, t: (b, t, 0)),   # q (residual + proj)
        pl.BlockSpec((1, Tk, D), lambda b, t: (b, 0, 0)),   # k (bf16)
        pl.BlockSpec((1, Tk, D), lambda b, t: (b, 0, 0)),   # v (bf16)
        pl.BlockSpec((1, 1, Tk), lambda b, t: (b, 0, 0)),   # additive mask bias
        full(wq), full(bq), full(wk), full(bk), full(wv), full(bv),
        full(wfc), full(bfc), full(g), full(be),
    ]

    out_spec_o = pl.BlockSpec((1, tq, D), lambda b, t: (b, t, 0))
    out_shape_o = jax.ShapeDtypeStruct((B, Tq, D), jnp.float32)
    if return_attn:
        out_specs = [out_spec_o,
                     pl.BlockSpec((n_head, 1, tq, Tk), lambda b, t: (0, b, t, 0))]
        out_shape = [out_shape_o,
                     jax.ShapeDtypeStruct((n_head, B, Tq, Tk), attn_dtype)]
    else:
        out_specs = out_spec_o
        out_shape = out_shape_o

    scratch_shapes = [
        pltpu.VMEM((Tk, n_head * d_k), jnp.bfloat16),   # projected K
        pltpu.VMEM((Tk, n_head * d_v), jnp.bfloat16),   # projected V
        pltpu.VMEM((tq, n_head * d_v), jnp.bfloat16),   # per-head contexts
    ]

    kern = functools.partial(mha_kernel, n_head=n_head, d_k=d_k, d_v=d_v,
                             return_attn=return_attn)
    result = pl.pallas_call(
        kern,
        grid=(B, nqt),
        in_specs=in_specs,
        out_specs=out_specs,
        out_shape=out_shape,
        scratch_shapes=scratch_shapes,
        compiler_params=pltpu.CompilerParams(
            # q-tile axis must be sequential: the projected-K/V scratch carries
            # across it.  Batch axis is parallel for megacore.
            dimension_semantics=("parallel", "arbitrary"),
            vmem_limit_bytes=64 * 1024 * 1024),
    )(q, k_bf, v_bf, bias, wq, bq, wk, bk, wv, bv, wfc, bfc, g, be)

    if return_attn:
        out, attn = result
        # torch returns attn as (n_head * B, Tq, Tk), head-major.
        return out, attn.reshape(n_head * B, Tq, Tk)
    return result


# ------------------------------------------------------------------
# Pure-JAX f32 reference (matches the PyTorch module's math).
# ------------------------------------------------------------------
def reference(q, k, v, mask, p, *, n_head, d_k, d_v):
    B, Tq, D = q.shape
    Tk = k.shape[1]
    residual = q
    qp = q @ p["wq"] + p["bq"]
    kp = k @ p["wk"] + p["bk"]
    vp = v @ p["wv"] + p["bv"]
    qh = qp.reshape(B, Tq, n_head, d_k).transpose(2, 0, 1, 3)
    kh = kp.reshape(B, Tk, n_head, d_k).transpose(2, 0, 1, 3)
    vh = vp.reshape(B, Tk, n_head, d_v).transpose(2, 0, 1, 3)
    s = jnp.einsum('hbqd,hbkd->hbqk', qh, kh) / math.sqrt(d_k)
    s = jnp.where(mask[None, :, None, :], -jnp.inf, s)
    attn = jax.nn.softmax(s, axis=-1)
    o = jnp.einsum('hbqk,hbkd->hbqd', attn, vh)
    o = o.transpose(1, 2, 0, 3).reshape(B, Tq, n_head * d_v)
    o = o @ p["wfc"] + p["bfc"]
    o = _layernorm(o + residual, p["g"], p["be"])
    return o, attn.reshape(n_head * B, Tq, Tk)


def init_params(key, d_model, n_head, d_k, d_v):
    ks = jax.random.split(key, 10)
    s = 0.1
    return {
        "wq": jax.random.normal(ks[0], (d_model, n_head * d_k), jnp.float32) * s,
        "bq": jax.random.normal(ks[1], (n_head * d_k,), jnp.float32) * s,
        "wk": jax.random.normal(ks[2], (d_model, n_head * d_k), jnp.float32) * s,
        "bk": jax.random.normal(ks[3], (n_head * d_k,), jnp.float32) * s,
        "wv": jax.random.normal(ks[4], (d_model, n_head * d_v), jnp.float32) * s,
        "bv": jax.random.normal(ks[5], (n_head * d_v,), jnp.float32) * s,
        "wfc": jax.random.normal(ks[6], (n_head * d_v, d_model), jnp.float32) * s,
        "bfc": jax.random.normal(ks[7], (d_model,), jnp.float32) * s,
        "g": 1.0 + 0.1 * jax.random.normal(ks[8], (d_model,), jnp.float32),
        "be": 0.1 * jax.random.normal(ks[9], (d_model,), jnp.float32),
    }


if __name__ == "__main__":
    B, T = 2, 8
    d_model = 32
    n_head = 2
    d_k = d_v = 32   # FastSpeech2 instantiates MultiHeadedAttention(n, d, d, d)

    key = jax.random.PRNGKey(0)
    kq, kk, kv, kp = jax.random.split(key, 4)
    q = jax.random.normal(kq, (B, T, d_model), jnp.float32)
    k = jax.random.normal(kk, (B, T, d_model), jnp.float32)
    v = jax.random.normal(kv, (B, T, d_model), jnp.float32)

    lengths = jnp.array([[T], [5]])                 # batch 1 has 3 padded steps
    mask = jnp.arange(T)[None, :] >= lengths        # True = padded key

    params = init_params(kp, d_model, n_head, d_k, d_v)

    out, attn = multi_head_attention(q, k, v, mask, params,
                                     n_head=n_head, d_k=d_k, d_v=d_v)
    out, attn = jax.block_until_ready((out, attn))

    # Faster variant that skips materializing / writing the attn matrix.
    out_na = multi_head_attention(q, k, v, mask, params, n_head=n_head,
                                  d_k=d_k, d_v=d_v, return_attn=False)
    out_na = jax.block_until_ready(out_na)

    out_ref, attn_ref = reference(q, k, v, mask, params,
                                  n_head=n_head, d_k=d_k, d_v=d_v)

    assert out.shape == (B, T, d_model) and attn.shape == (n_head * B, T, T)
    # bf16 MXU matmuls + bf16 attn store -> loose-ish tolerance vs f32 ref.
    assert jnp.allclose(out, out_ref, atol=3e-2, rtol=3e-2), \
        float(jnp.max(jnp.abs(out - out_ref)))
    assert jnp.allclose(out_na, out_ref, atol=3e-2, rtol=3e-2), \
        float(jnp.max(jnp.abs(out_na - out_ref)))
    assert jnp.allclose(attn.astype(jnp.float32), attn_ref, atol=2e-2, rtol=2e-2), \
        float(jnp.max(jnp.abs(attn.astype(jnp.float32) - attn_ref)))

    print("KERNEL_OK")
</pallas_src>

<mosaic_0001>
module attributes {stable_mosaic.version = 11 : i64} {
  func.func @mha_kernel(%arg0: i32, %arg1: i32, %arg2: memref<1x8x32xf32, #tpu.memory_space<vmem>>, %arg3: memref<1x8x32xbf16, #tpu.memory_space<vmem>>, %arg4: memref<1x8x32xbf16, #tpu.memory_space<vmem>>, %arg5: memref<1x1x8xf32, #tpu.memory_space<vmem>>, %arg6: memref<32x64xbf16, #tpu.memory_space<vmem>>, %arg7: memref<1x64xf32, #tpu.memory_space<vmem>>, %arg8: memref<32x64xbf16, #tpu.memory_space<vmem>>, %arg9: memref<1x64xf32, #tpu.memory_space<vmem>>, %arg10: memref<32x64xbf16, #tpu.memory_space<vmem>>, %arg11: memref<1x64xf32, #tpu.memory_space<vmem>>, %arg12: memref<64x32xbf16, #tpu.memory_space<vmem>>, %arg13: memref<1x32xf32, #tpu.memory_space<vmem>>, %arg14: memref<1x32xf32, #tpu.memory_space<vmem>>, %arg15: memref<1x32xf32, #tpu.memory_space<vmem>>, %arg16: memref<1x8x32xf32, #tpu.memory_space<vmem>>, %arg17: memref<2x1x8x8xbf16, #tpu.memory_space<vmem>>, %arg18: memref<8x64xbf16, #tpu.memory_space<vmem>>, %arg19: memref<8x64xbf16, #tpu.memory_space<vmem>>, %arg20: memref<8x64xbf16, #tpu.memory_space<vmem>>) attributes {dimension_semantics = [#tpu.dimension_semantics<parallel>, #tpu.dimension_semantics<arbitrary>], iteration_bounds = array<i64: 2, 1>, scalar_prefetch = 0 : i64, scratch_operands = 3 : i64, tpu.core_type = #tpu.core_type<tc>, window_params = [{transform_indices = @transform_0, window_bounds = array<i64: 1, 8, 32>}, {transform_indices = @transform_1, window_bounds = array<i64: 1, 8, 32>}, {transform_indices = @transform_2, window_bounds = array<i64: 1, 8, 32>}, {transform_indices = @transform_3, window_bounds = array<i64: 1, 1, 8>}, {pipeline_mode = #tpu.pipeline_mode<synchronous>, transform_indices = @transform_4, window_bounds = array<i64: 32, 64>}, {pipeline_mode = #tpu.pipeline_mode<synchronous>, transform_indices = @transform_5, window_bounds = array<i64: 1, 64>}, {pipeline_mode = #tpu.pipeline_mode<synchronous>, transform_indices = @transform_6, window_bounds = array<i64: 32, 64>}, {pipeline_mode = #tpu.pipeline_mode<synchronous>, transform_indices = @transform_7, window_bounds = array<i64: 1, 64>}, {pipeline_mode = #tpu.pipeline_mode<synchronous>, transform_indices = @transform_8, window_bounds = array<i64: 32, 64>}, {pipeline_mode = #tpu.pipeline_mode<synchronous>, transform_indices = @transform_9, window_bounds = array<i64: 1, 64>}, {pipeline_mode = #tpu.pipeline_mode<synchronous>, transform_indices = @transform_10, window_bounds = array<i64: 64, 32>}, {pipeline_mode = #tpu.pipeline_mode<synchronous>, transform_indices = @transform_11, window_bounds = array<i64: 1, 32>}, {pipeline_mode = #tpu.pipeline_mode<synchronous>, transform_indices = @transform_12, window_bounds = array<i64: 1, 32>}, {pipeline_mode = #tpu.pipeline_mode<synchronous>, transform_indices = @transform_13, window_bounds = array<i64: 1, 32>}, {transform_indices = @transform_14, window_bounds = array<i64: 1, 8, 32>}, {transform_indices = @transform_15, window_bounds = array<i64: 2, 1, 8, 8>}]} {
    %c0_i32 = arith.constant 0 : i32
    %0 = arith.cmpi eq, %arg1, %c0_i32 : i32
    %1 = arith.extui %0 : i1 to i32
    %c0_i32_0 = arith.constant 0 : i32
    %2 = arith.cmpi ne, %1, %c0_i32_0 : i32
    scf.if %2 {
      %c0_55 = arith.constant 0 : index
      %c0_56 = arith.constant 0 : index
      %c0_57 = arith.constant 0 : index
      %95 = vector.load %arg3[%c0_55, %c0_56, %c0_57] : memref<1x8x32xbf16, #tpu.memory_space<vmem>>, vector<1x8x32xbf16>
      %96 = vector.shape_cast %95 : vector<1x8x32xbf16> to vector<8x32xbf16>
      %c0_58 = arith.constant 0 : index
      %c0_59 = arith.constant 0 : index
      %97 = vector.load %arg8[%c0_58, %c0_59] : memref<32x64xbf16, #tpu.memory_space<vmem>>, vector<32x64xbf16>
      %cst_60 = arith.constant dense<0.000000e+00> : vector<8x64xf32>
      %98 = tpu.matmul %96, %97, %cst_60 {dimension_numbers = #tpu.dot_dimension_numbers<[1], [0], [0], [1], [0, 0, 1, 1], [], []>} : vector<8x32xbf16>, vector<32x64xbf16>, vector<8x64xf32> -> vector<8x64xf32>
      %c0_61 = arith.constant 0 : index
      %c0_62 = arith.constant 0 : index
      %99 = vector.load %arg9[%c0_61, %c0_62] : memref<1x64xf32, #tpu.memory_space<vmem>>, vector<1x64xf32>
      %100 = vector.broadcast %99 : vector<1x64xf32> to vector<8x64xf32>
      %101 = arith.addf %98, %100 : vector<8x64xf32>
      %c0_63 = arith.constant 0 : index
      %c0_64 = arith.constant 0 : index
      %c0_65 = arith.constant 0 : index
      %102 = vector.load %arg4[%c0_63, %c0_64, %c0_65] : memref<1x8x32xbf16, #tpu.memory_space<vmem>>, vector<1x8x32xbf16>
      %103 = vector.shape_cast %102 : vector<1x8x32xbf16> to vector<8x32xbf16>
      %c0_66 = arith.constant 0 : index
      %c0_67 = arith.constant 0 : index
      %104 = vector.load %arg10[%c0_66, %c0_67] : memref<32x64xbf16, #tpu.memory_space<vmem>>, vector<32x64xbf16>
      %cst_68 = arith.constant dense<0.000000e+00> : vector<8x64xf32>
      %105 = tpu.matmul %103, %104, %cst_68 {dimension_numbers = #tpu.dot_dimension_numbers<[1], [0], [0], [1], [0, 0, 1, 1], [], []>} : vector<8x32xbf16>, vector<32x64xbf16>, vector<8x64xf32> -> vector<8x64xf32>
      %c0_69 = arith.constant 0 : index
      %c0_70 = arith.constant 0 : index
      %106 = vector.load %arg11[%c0_69, %c0_70] : memref<1x64xf32, #tpu.memory_space<vmem>>, vector<1x64xf32>
      %107 = vector.broadcast %106 : vector<1x64xf32> to vector<8x64xf32>
      %108 = arith.addf %105, %107 : vector<8x64xf32>
      %109 = arith.truncf %101 : vector<8x64xf32> to vector<8x64xbf16>
      %c0_71 = arith.constant 0 : index
      %c0_72 = arith.constant 0 : index
      %110 = vector.load %arg18[%c0_71, %c0_72] : memref<8x64xbf16, #tpu.memory_space<vmem>>, vector<8x64xbf16>
      tpu.vector_store %arg18[%c0_71, %c0_72], %109 {strides = array<i32>} : memref<8x64xbf16, #tpu.memory_space<vmem>>, vector<8x64xbf16>,
      %111 = arith.truncf %108 : vector<8x64xf32> to vector<8x64xbf16>
      %c0_73 = arith.constant 0 : index
      %c0_74 = arith.constant 0 : index
      %112 = vector.load %arg19[%c0_73, %c0_74] : memref<8x64xbf16, #tpu.memory_space<vmem>>, vector<8x64xbf16>
      tpu.vector_store %arg19[%c0_73, %c0_74], %111 {strides = array<i32>} : memref<8x64xbf16, #tpu.memory_space<vmem>>, vector<8x64xbf16>,
    } else {
    }
    %c0 = arith.constant 0 : index
    %c0_1 = arith.constant 0 : index
    %c0_2 = arith.constant 0 : index
    %3 = vector.load %arg2[%c0, %c0_1, %c0_2] : memref<1x8x32xf32, #tpu.memory_space<vmem>>, vector<1x8x32xf32>
    %4 = vector.shape_cast %3 : vector<1x8x32xf32> to vector<8x32xf32>
    %5 = arith.truncf %4 : vector<8x32xf32> to vector<8x32xbf16>
    %c0_3 = arith.constant 0 : index
    %c0_4 = arith.constant 0 : index
    %6 = vector.load %arg6[%c0_3, %c0_4] : memref<32x64xbf16, #tpu.memory_space<vmem>>, vector<32x64xbf16>
    %cst = arith.constant dense<0.000000e+00> : vector<8x64xf32>
    %7 = tpu.matmul %5, %6, %cst {dimension_numbers = #tpu.dot_dimension_numbers<[1], [0], [0], [1], [0, 0, 1, 1], [], []>} : vector<8x32xbf16>, vector<32x64xbf16>, vector<8x64xf32> -> vector<8x64xf32>
    %c0_5 = arith.constant 0 : index
    %c0_6 = arith.constant 0 : index
    %8 = vector.load %arg7[%c0_5, %c0_6] : memref<1x64xf32, #tpu.memory_space<vmem>>, vector<1x64xf32>
    %9 = vector.broadcast %8 : vector<1x64xf32> to vector<8x64xf32>
    %10 = arith.addf %7, %9 : vector<8x64xf32>
    %c0_7 = arith.constant 0 : index
    %c0_8 = arith.constant 0 : index
    %c0_9 = arith.constant 0 : index
    %11 = vector.load %arg5[%c0_7, %c0_8, %c0_9] : memref<1x1x8xf32, #tpu.memory_space<vmem>>, vector<1x1x8xf32>
    %12 = vector.shape_cast %11 : vector<1x1x8xf32> to vector<1x8xf32>
    %13 = vector.extract_strided_slice %10 {offsets = [0, 0], sizes = [8, 32], strides = [1, 1]} : vector<8x64xf32> to vector<8x32xf32>
    %14 = arith.truncf %13 : vector<8x32xf32> to vector<8x32xbf16>
    %c0_10 = arith.constant 0 : index
    %c0_11 = arith.constant 0 : index
    %15 = vector.load %arg18[%c0_10, %c0_11] : memref<8x64xbf16, #tpu.memory_space<vmem>>, vector<8x32xbf16>
    %c0_12 = arith.constant 0 : index
    %c0_13 = arith.constant 0 : index
    %16 = vector.load %arg19[%c0_12, %c0_13] : memref<8x64xbf16, #tpu.memory_space<vmem>>, vector<8x32xbf16>
    "tpu.trace_start"() <{level = 10 : i32, message = "qd,kd->qk"}> : () -> ()
    %cst_14 = arith.constant dense<0.000000e+00> : vector<8x8xf32>
    %17 = tpu.matmul %14, %15, %cst_14 {dimension_numbers = #tpu.dot_dimension_numbers<[1], [1], [0], [0], [0, 0, 1, 0], [], []>} : vector<8x32xbf16>, vector<8x32xbf16>, vector<8x8xf32> -> vector<8x8xf32>
    "tpu.trace_stop"() : () -> ()
    %18 = vector.broadcast %12 : vector<1x8xf32> to vector<8x8xf32>
    %19 = arith.addf %17, %18 : vector<8x8xf32>
    %cst_15 = arith.constant dense<0xFF800000> : vector<8xf32>
    %20 = vector.multi_reduction <maximumf>, %19, %cst_15 [1] : vector<8x8xf32> to vector<8xf32>
    %21 = vector.shape_cast %20 : vector<8xf32> to vector<8x1xf32>
    %22 = vector.broadcast %21 : vector<8x1xf32> to vector<8x8xf32>
    %23 = arith.subf %19, %22 : vector<8x8xf32>
    %24 = math.exp %23 : vector<8x8xf32>
    %cst_16 = arith.constant dense<0.000000e+00> : vector<8xf32>
    %25 = vector.multi_reduction <add>, %24, %cst_16 [1] : vector<8x8xf32> to vector<8xf32>
    %26 = vector.shape_cast %25 : vector<8xf32> to vector<8x1xf32>
    %27 = vector.broadcast %26 : vector<8x1xf32> to vector<8x8xf32>
    %28 = arith.divf %24, %27 : vector<8x8xf32>
    %29 = arith.truncf %28 : vector<8x8xf32> to vector<8x8xbf16>
    %c0_17 = arith.constant 0 : index
    %c0_18 = arith.constant 0 : index
    %c0_19 = arith.constant 0 : index
    %c0_20 = arith.constant 0 : index
    %30 = vector.load %arg17[%c0_17, %c0_18, %c0_19, %c0_20] : memref<2x1x8x8xbf16, #tpu.memory_space<vmem>>, vector<1x1x8x8xbf16>
    %31 = vector.shape_cast %30 : vector<1x1x8x8xbf16> to vector<8x8xbf16>
    %32 = vector.shape_cast %29 : vector<8x8xbf16> to vector<1x1x8x8xbf16>
    tpu.vector_store %arg17[%c0_17, %c0_18, %c0_19, %c0_20], %32 {strides = array<i32>} : memref<2x1x8x8xbf16, #tpu.memory_space<vmem>>, vector<1x1x8x8xbf16>,
    %33 = arith.truncf %28 : vector<8x8xf32> to vector<8x8xbf16>
    %cst_21 = arith.constant dense<0.000000e+00> : vector<8x32xf32>
    %34 = tpu.matmul %33, %16, %cst_21 {dimension_numbers = #tpu.dot_dimension_numbers<[1], [0], [0], [1], [0, 0, 1, 1], [], []>} : vector<8x8xbf16>, vector<8x32xbf16>, vector<8x32xf32> -> vector<8x32xf32>
    %35 = arith.truncf %34 : vector<8x32xf32> to vector<8x32xbf16>
    %c0_22 = arith.constant 0 : index
    %c0_23 = arith.constant 0 : index
    %36 = vector.load %arg20[%c0_22, %c0_23] : memref<8x64xbf16, #tpu.memory_space<vmem>>, vector<8x32xbf16>
    tpu.vector_store %arg20[%c0_22, %c0_23], %35 {strides = array<i32>} : memref<8x64xbf16, #tpu.memory_space<vmem>>, vector<8x32xbf16>,
    %37 = vector.extract_strided_slice %10 {offsets = [0, 32], sizes = [8, 32], strides = [1, 1]} : vector<8x64xf32> to vector<8x32xf32>
    %38 = arith.truncf %37 : vector<8x32xf32> to vector<8x32xbf16>
    %c0_24 = arith.constant 0 : index
    %c32 = arith.constant 32 : index
    %39 = vector.load %arg18[%c0_24, %c32] : memref<8x64xbf16, #tpu.memory_space<vmem>>, vector<8x32xbf16>
    %c0_25 = arith.constant 0 : index
    %c32_26 = arith.constant 32 : index
    %40 = vector.load %arg19[%c0_25, %c32_26] : memref<8x64xbf16, #tpu.memory_space<vmem>>, vector<8x32xbf16>
    "tpu.trace_start"() <{level = 10 : i32, message = "qd,kd->qk"}> : () -> ()
    %cst_27 = arith.constant dense<0.000000e+00> : vector<8x8xf32>
    %41 = tpu.matmul %38, %39, %cst_27 {dimension_numbers = #tpu.dot_dimension_numbers<[1], [1], [0], [0], [0, 0, 1, 0], [], []>} : vector<8x32xbf16>, vector<8x32xbf16>, vector<8x8xf32> -> vector<8x8xf32>
    "tpu.trace_stop"() : () -> ()
    %42 = vector.broadcast %12 : vector<1x8xf32> to vector<8x8xf32>
    %43 = arith.addf %41, %42 : vector<8x8xf32>
    %cst_28 = arith.constant dense<0xFF800000> : vector<8xf32>
    %44 = vector.multi_reduction <maximumf>, %43, %cst_28 [1] : vector<8x8xf32> to vector<8xf32>
    %45 = vector.shape_cast %44 : vector<8xf32> to vector<8x1xf32>
    %46 = vector.broadcast %45 : vector<8x1xf32> to vector<8x8xf32>
    %47 = arith.subf %43, %46 : vector<8x8xf32>
    %48 = math.exp %47 : vector<8x8xf32>
    %cst_29 = arith.constant dense<0.000000e+00> : vector<8xf32>
    %49 = vector.multi_reduction <add>, %48, %cst_29 [1] : vector<8x8xf32> to vector<8xf32>
    %50 = vector.shape_cast %49 : vector<8xf32> to vector<8x1xf32>
    %51 = vector.broadcast %50 : vector<8x1xf32> to vector<8x8xf32>
    %52 = arith.divf %48, %51 : vector<8x8xf32>
    %53 = arith.truncf %52 : vector<8x8xf32> to vector<8x8xbf16>
    %c1 = arith.constant 1 : index
    %c0_30 = arith.constant 0 : index
    %c0_31 = arith.constant 0 : index
    %c0_32 = arith.constant 0 : index
    %54 = vector.load %arg17[%c1, %c0_30, %c0_31, %c0_32] : memref<2x1x8x8xbf16, #tpu.memory_space<vmem>>, vector<1x1x8x8xbf16>
    %55 = vector.shape_cast %54 : vector<1x1x8x8xbf16> to vector<8x8xbf16>
    %56 = vector.shape_cast %53 : vector<8x8xbf16> to vector<1x1x8x8xbf16>
    tpu.vector_store %arg17[%c1, %c0_30, %c0_31, %c0_32], %56 {strides = array<i32>} : memref<2x1x8x8xbf16, #tpu.memory_space<vmem>>, vector<1x1x8x8xbf16>,
    %57 = arith.truncf %52 : vector<8x8xf32> to vector<8x8xbf16>
    %cst_33 = arith.constant dense<0.000000e+00> : vector<8x32xf32>
    %58 = tpu.matmul %57, %40, %cst_33 {dimension_numbers = #tpu.dot_dimension_numbers<[1], [0], [0], [1], [0, 0, 1, 1], [], []>} : vector<8x8xbf16>, vector<8x32xbf16>, vector<8x32xf32> -> vector<8x32xf32>
    %59 = arith.truncf %58 : vector<8x32xf32> to vector<8x32xbf16>
    %c0_34 = arith.constant 0 : index
    %c32_35 = arith.constant 32 : index
    %60 = vector.load %arg20[%c0_34, %c32_35] : memref<8x64xbf16, #tpu.memory_space<vmem>>, vector<8x32xbf16>
    tpu.vector_store %arg20[%c0_34, %c32_35], %59 {strides = array<i32>} : memref<8x64xbf16, #tpu.memory_space<vmem>>, vector<8x32xbf16>,
    %c0_36 = arith.constant 0 : index
    %c0_37 = arith.constant 0 : index
    %61 = vector.load %arg20[%c0_36, %c0_37] : memref<8x64xbf16, #tpu.memory_space<vmem>>, vector<8x64xbf16>
    %c0_38 = arith.constant 0 : index
    %c0_39 = arith.constant 0 : index
    %62 = vector.load %arg12[%c0_38, %c0_39] : memref<64x32xbf16, #tpu.memory_space<vmem>>, vector<64x32xbf16>
    %cst_40 = arith.constant dense<0.000000e+00> : vector<8x32xf32>
    %63 = tpu.matmul %61, %62, %cst_40 {dimension_numbers = #tpu.dot_dimension_numbers<[1], [0], [0], [1], [0, 0, 1, 1], [], []>} : vector<8x64xbf16>, vector<64x32xbf16>, vector<8x32xf32> -> vector<8x32xf32>
    %c0_41 = arith.constant 0 : index
    %c0_42 = arith.constant 0 : index
    %64 = vector.load %arg13[%c0_41, %c0_42] : memref<1x32xf32, #tpu.memory_space<vmem>>, vector<1x32xf32>
    %65 = vector.broadcast %64 : vector<1x32xf32> to vector<8x32xf32>
    %66 = arith.addf %63, %65 : vector<8x32xf32>
    %67 = arith.addf %66, %4 : vector<8x32xf32>
    %c0_43 = arith.constant 0 : index
    %c0_44 = arith.constant 0 : index
    %68 = vector.load %arg14[%c0_43, %c0_44] : memref<1x32xf32, #tpu.memory_space<vmem>>, vector<1x32xf32>
    %c0_45 = arith.constant 0 : index
    %c0_46 = arith.constant 0 : index
    %69 = vector.load %arg15[%c0_45, %c0_46] : memref<1x32xf32, #tpu.memory_space<vmem>>, vector<1x32xf32>
    %cst_47 = arith.constant dense<0.000000e+00> : vector<8xf32>
    %70 = vector.multi_reduction <add>, %67, %cst_47 [1] : vector<8x32xf32> to vector<8xf32>
    %71 = vector.shape_cast %70 : vector<8xf32> to vector<8x1xf32>
    %cst_48 = arith.constant 3.200000e+01 : f32
    %72 = vector.broadcast %cst_48 : f32 to vector<8x1xf32>
    %73 = arith.divf %71, %72 : vector<8x1xf32>
    %74 = vector.broadcast %73 : vector<8x1xf32> to vector<8x32xf32>
    %75 = arith.subf %67, %74 : vector<8x32xf32>
    %76 = arith.mulf %75, %75 : vector<8x32xf32>
    %cst_49 = arith.constant dense<0.000000e+00> : vector<8xf32>
    %77 = vector.multi_reduction <add>, %76, %cst_49 [1] : vector<8x32xf32> to vector<8xf32>
    %78 = vector.shape_cast %77 : vector<8xf32> to vector<8x1xf32>
    %cst_50 = arith.constant 3.200000e+01 : f32
    %79 = vector.broadcast %cst_50 : f32 to vector<8x1xf32>
    %80 = arith.divf %78, %79 : vector<8x1xf32>
    %81 = vector.broadcast %73 : vector<8x1xf32> to vector<8x32xf32>
    %82 = arith.subf %67, %81 : vector<8x32xf32>
    %cst_51 = arith.constant 9.99999974E-6 : f32
    %83 = vector.broadcast %cst_51 : f32 to vector<8x1xf32>
    %84 = arith.addf %80, %83 : vector<8x1xf32>
    %85 = math.rsqrt %84 : vector<8x1xf32>
    %86 = vector.broadcast %85 : vector<8x1xf32> to vector<8x32xf32>
    %87 = arith.mulf %82, %86 : vector<8x32xf32>
    %88 = vector.broadcast %68 : vector<1x32xf32> to vector<8x32xf32>
    %89 = arith.mulf %87, %88 : vector<8x32xf32>
    %90 = vector.broadcast %69 : vector<1x32xf32> to vector<8x32xf32>
    %91 = arith.addf %89, %90 : vector<8x32xf32>
    %c0_52 = arith.constant 0 : index
    %c0_53 = arith.constant 0 : index
    %c0_54 = arith.constant 0 : index
    %92 = vector.load %arg16[%c0_52, %c0_53, %c0_54] : memref<1x8x32xf32, #tpu.memory_space<vmem>>, vector<1x8x32xf32>
    %93 = vector.shape_cast %92 : vector<1x8x32xf32> to vector<8x32xf32>
    %94 = vector.shape_cast %91 : vector<8x32xf32> to vector<1x8x32xf32>
    tpu.vector_store %arg16[%c0_52, %c0_53, %c0_54], %94 {strides = array<i32>} : memref<1x8x32xf32, #tpu.memory_space<vmem>>, vector<1x8x32xf32>,
    return
  }
  func.func @transform_0(%arg0: i32, %arg1: i32) -> (i32, i32, i32) {
    %c0_i32 = arith.constant 0 : i32
    %c0_i32_0 = arith.constant 0 : i32
    return %arg0, %arg1, %c0_i32 : i32, i32, i32
  }
  func.func @transform_1(%arg0: i32, %arg1: i32) -> (i32, i32, i32) {
    %c0_i32 = arith.constant 0 : i32
    %c0_i32_0 = arith.constant 0 : i32
    %c0_i32_1 = arith.constant 0 : i32
    return %arg0, %c0_i32, %c0_i32_0 : i32, i32, i32
  }
  func.func @transform_2(%arg0: i32, %arg1: i32) -> (i32, i32, i32) {
    %c0_i32 = arith.constant 0 : i32
    %c0_i32_0 = arith.constant 0 : i32
    %c0_i32_1 = arith.constant 0 : i32
    return %arg0, %c0_i32, %c0_i32_0 : i32, i32, i32
  }
  func.func @transform_3(%arg0: i32, %arg1: i32) -> (i32, i32, i32) {
    %c0_i32 = arith.constant 0 : i32
    %c0_i32_0 = arith.constant 0 : i32
    %c0_i32_1 = arith.constant 0 : i32
    return %arg0, %c0_i32, %c0_i32_0 : i32, i32, i32
  }
  func.func @transform_4(%arg0: i32, %arg1: i32) -> (i32, i32) {
    %c0_i32 = arith.constant 0 : i32
    %c0_i32_0 = arith.constant 0 : i32
    %c0_i32_1 = arith.constant 0 : i32
    return %c0_i32, %c0_i32_0 : i32, i32
  }
  func.func @transform_5(%arg0: i32, %arg1: i32) -> (i32, i32) {
    %c0_i32 = arith.constant 0 : i32
    %c0_i32_0 = arith.constant 0 : i32
    %c0_i32_1 = arith.constant 0 : i32
    return %c0_i32, %c0_i32_0 : i32, i32
  }
  func.func @transform_6(%arg0: i32, %arg1: i32) -> (i32, i32) {
    %c0_i32 = arith.constant 0 : i32
    %c0_i32_0 = arith.constant 0 : i32
    %c0_i32_1 = arith.constant 0 : i32
    return %c0_i32, %c0_i32_0 : i32, i32
  }
  func.func @transform_7(%arg0: i32, %arg1: i32) -> (i32, i32) {
    %c0_i32 = arith.constant 0 : i32
    %c0_i32_0 = arith.constant 0 : i32
    %c0_i32_1 = arith.constant 0 : i32
    return %c0_i32, %c0_i32_0 : i32, i32
  }
  func.func @transform_8(%arg0: i32, %arg1: i32) -> (i32, i32) {
    %c0_i32 = arith.constant 0 : i32
    %c0_i32_0 = arith.constant 0 : i32
    %c0_i32_1 = arith.constant 0 : i32
    return %c0_i32, %c0_i32_0 : i32, i32
  }
  func.func @transform_9(%arg0: i32, %arg1: i32) -> (i32, i32) {
    %c0_i32 = arith.constant 0 : i32
    %c0_i32_0 = arith.constant 0 : i32
    %c0_i32_1 = arith.constant 0 : i32
    return %c0_i32, %c0_i32_0 : i32, i32
  }
  func.func @transform_10(%arg0: i32, %arg1: i32) -> (i32, i32) {
    %c0_i32 = arith.constant 0 : i32
    %c0_i32_0 = arith.constant 0 : i32
    %c0_i32_1 = arith.constant 0 : i32
    return %c0_i32, %c0_i32_0 : i32, i32
  }
  func.func @transform_11(%arg0: i32, %arg1: i32) -> (i32, i32) {
    %c0_i32 = arith.constant 0 : i32
    %c0_i32_0 = arith.constant 0 : i32
    %c0_i32_1 = arith.constant 0 : i32
    return %c0_i32, %c0_i32_0 : i32, i32
  }
  func.func @transform_12(%arg0: i32, %arg1: i32) -> (i32, i32) {
    %c0_i32 = arith.constant 0 : i32
    %c0_i32_0 = arith.constant 0 : i32
    %c0_i32_1 = arith.constant 0 : i32
    return %c0_i32, %c0_i32_0 : i32, i32
  }
  func.func @transform_13(%arg0: i32, %arg1: i32) -> (i32, i32) {
    %c0_i32 = arith.constant 0 : i32
    %c0_i32_0 = arith.constant 0 : i32
    %c0_i32_1 = arith.constant 0 : i32
    return %c0_i32, %c0_i32_0 : i32, i32
  }
  func.func @transform_14(%arg0: i32, %arg1: i32) -> (i32, i32, i32) {
    %c0_i32 = arith.constant 0 : i32
    %c0_i32_0 = arith.constant 0 : i32
    return %arg0, %arg1, %c0_i32 : i32, i32, i32
  }
  func.func @transform_15(%arg0: i32, %arg1: i32) -> (i32, i32, i32, i32) {
    %c0_i32 = arith.constant 0 : i32
    %c0_i32_0 = arith.constant 0 : i32
    %c0_i32_1 = arith.constant 0 : i32
    return %c0_i32, %arg0, %arg1, %c0_i32_0 : i32, i32, i32, i32
  }
}

</mosaic_0001>

<llo_original>
// kernel: tpu_custom_call.1
$region0: #{tpu_custom_call.1}
  #allocation0 [shape = 'u32[]', space=smem, size = 0x4, offset = 0x4, fixed_abs, tag = 'smem constant byte address 0x4 - core index']
  #allocation1 [shape = 'u32[144,128]{1,0:T(1,128)}', space=vmem, size = 0x12000, scoped, tag = 'internal scratch']
  #allocation2 [shape = 'bf16[8,64]{1,0:T(8,128)(2,1)}', space=vmem, size = 0x800, scoped, tag = 'scratch operand']
  #allocation3 [shape = 'bf16[8,64]{1,0:T(8,128)(2,1)}', space=vmem, size = 0x800, scoped, tag = 'scratch operand']
  #allocation4 [shape = 'bf16[8,64]{1,0:T(8,128)(2,1)}', space=vmem, size = 0x800, scoped, tag = 'scratch operand']
  %s0 = inlined_call_operand.hbm [shape: f32[2,8,32], index: 0, kind: input, shape index: {}]
  %s1 = inlined_call_operand.hbm [shape: bf16[2,8,32], index: 1, kind: input, shape index: {}]
  %s2 = inlined_call_operand.hbm [shape: bf16[2,8,32], index: 2, kind: input, shape index: {}]
  %s3 = inlined_call_operand.hbm [shape: f32[2,1,8], index: 3, kind: input, shape index: {}]
  %s4 = inlined_call_operand.hbm [shape: bf16[32,64], index: 4, kind: input, shape index: {}]
  %s5 = inlined_call_operand.hbm [shape: f32[1,64], index: 5, kind: input, shape index: {}]
  %s6 = inlined_call_operand.hbm [shape: bf16[32,64], index: 6, kind: input, shape index: {}]
  %s7 = inlined_call_operand.hbm [shape: f32[1,64], index: 7, kind: input, shape index: {}]
  %s8 = inlined_call_operand.hbm [shape: bf16[32,64], index: 8, kind: input, shape index: {}]
  %s9 = inlined_call_operand.hbm [shape: f32[1,64], index: 9, kind: input, shape index: {}]
  %s10 = inlined_call_operand.hbm [shape: bf16[64,32], index: 10, kind: input, shape index: {}]
  %s11 = inlined_call_operand.hbm [shape: f32[1,32], index: 11, kind: input, shape index: {}]
  %s12 = inlined_call_operand.hbm [shape: f32[1,32], index: 12, kind: input, shape index: {}]
  %s13 = inlined_call_operand.hbm [shape: f32[1,32], index: 13, kind: input, shape index: {}]
  %s14 = inlined_call_operand.hbm [shape: f32[2,8,32], index: 14, kind: output, shape index: {0}]
  %s15 = inlined_call_operand.hbm [shape: bf16[2,2,8,8], index: 15, kind: output, shape index: {1}]
  %16 = xla_tuple %s14, %s15
  %s17 = sld [smem:[#allocation0]]
  $region157: #{tpu_custom_call.1} parent=0
    _
  %s19 = ssub.s32 1, %s17
  %s20 = scalar_select 0, %s19, %s17
  $region1: #{tpu_custom_call.1} parent=0
    #allocation5 [shape = 'u8[8192]{0}', space=vmem, size = 0x2000, scoped, tag = 'input window, operand 0']
    #allocation6 [shape = 's32[2]{0}', space=sflag, size = 0x8, scoped, tag = 'scoped memory for tpu_custom_call.1']
    #allocation7 [shape = 's32[2]{0}', space=sflag, size = 0x8, scoped, tag = 'scoped memory for tpu_custom_call.1']
    #allocation8 [shape = 'u8[4096]{0}', space=vmem, size = 0x1000, scoped, tag = 'input window, operand 1']
    #allocation9 [shape = 's32[2]{0}', space=sflag, size = 0x8, scoped, tag = 'scoped memory for tpu_custom_call.1']
    #allocation10 [shape = 'u8[4096]{0}', space=vmem, size = 0x1000, scoped, tag = 'input window, operand 2']
    #allocation11 [shape = 'u8[1024]{0}', space=vmem, size = 0x400, scoped, tag = 'input window, operand 3']
    #allocation12 [shape = 's32[2]{0}', space=sflag, size = 0x8, scoped, tag = 'scoped memory for tpu_custom_call.1']
    #allocation13 [shape = 'u8[8192]{0}', space=vmem, size = 0x2000, scoped, tag = 'input window, operand 4, single buffered']
    #allocation14 [shape = 'u8[512]{0}', space=vmem, size = 0x400, scoped, tag = 'input window, operand 5, single buffered']
    #allocation15 [shape = 's32[1]{0}', space=sflag, size = 0x4, scoped, tag = 'scoped memory for tpu_custom_call.1']
    #allocation16 [shape = 'u8[8192]{0}', space=vmem, size = 0x2000, scoped, tag = 'input window, operand 6, single buffered']
    #allocation17 [shape = 'u8[512]{0}', space=vmem, size = 0x400, scoped, tag = 'input window, operand 7, single buffered']
    #allocation18 [shape = 's32[1]{0}', space=sflag, size = 0x4, scoped, tag = 'scoped memory for tpu_custom_call.1']
    #allocation19 [shape = 'u8[8192]{0}', space=vmem, size = 0x2000, scoped, tag = 'input window, operand 8, single buffered']
    #allocation20 [shape = 'u8[512]{0}', space=vmem, size = 0x400, scoped, tag = 'input window, operand 9, single buffered']
    #allocation21 [shape = 's32[1]{0}', space=sflag, size = 0x4, scoped, tag = 'scoped memory for tpu_custom_call.1']
    #allocation22 [shape = 'u8[16384]{0}', space=vmem, size = 0x4000, scoped, tag = 'input window, operand 10, single buffered']
    #allocation23 [shape = 'u8[512]{0}', space=vmem, size = 0x400, scoped, tag = 'input window, operand 11, single buffered']
    #allocation24 [shape = 's32[1]{0}', space=sflag, size = 0x4, scoped, tag = 'scoped memory for tpu_custom_call.1']
    #allocation25 [shape = 'u8[512]{0}', space=vmem, size = 0x400, scoped, tag = 'input window, operand 12, single buffered']
    #allocation26 [shape = 'u8[512]{0}', space=vmem, size = 0x400, scoped, tag = 'input window, operand 13, single buffered']
    #allocation27 [shape = 's32[1]{0}', space=sflag, size = 0x4, scoped, tag = 'scoped memory for tpu_custom_call.1']
    #allocation28 [shape = 'u8[8192]{0}', space=vmem, size = 0x2000, scoped, tag = 'output window, operand 0']
    #allocation29 [shape = 'u8[8192]{0}', space=vmem, size = 0x2000, scoped, tag = 'output window, operand 1']
    #allocation30 [shape = 's32[2]{0}', space=sflag, size = 0x8, scoped, tag = 'scoped memory for tpu_custom_call.1']
    %21 = vsyncpa [#allocation6], 0
    %s22 = scalar_lea.sflag [#allocation6], 1
    %23 = vsyncpa %s22, 0
    %24 = vsyncpa [#allocation9], 0
    %s25 = scalar_lea.sflag [#allocation9], 1
    %26 = vsyncpa %s25, 0
    %27 = vsyncpa [#allocation12], 0
    %s28 = scalar_lea.sflag [#allocation12], 1
    %29 = vsyncpa %s28, 0
    %30 = vsyncpa [#allocation15], 0
    %31 = vsyncpa [#allocation18], 0
    %32 = vsyncpa [#allocation21], 0
    %33 = vsyncpa [#allocation24], 0
    %34 = vsyncpa [#allocation27], 0
    %35 = vsyncpa [#allocation7], 0
    %s36 = scalar_lea.sflag [#allocation7], 1
    %37 = vsyncpa %s36, 0
    %38 = vsyncpa [#allocation30], 0
    %s39 = scalar_lea.sflag [#allocation30], 1
    %40 = vsyncpa %s39, 0
    loop: start=0, step=1, limit=4
    $region2: #{tpu_custom_call.1} parent=1 // loop_pre_header
      _
    $region3: #{tpu_custom_call.1} parent=1 // loop_header
      %s42 = sphi 0, %s46
      %p43 = scmp.ge.s32.totalorder %s42, 4
      %s49 = sphi 0, %s61
      %s50 = sphi 0, %s57
      %s51 = sphi 0, %s49
      %s52 = sphi 0, %s50
      %s53 = sphi 0, %s51
      %s54 = sphi 0, %s52
      %s66 = sphi 0, %s68
      %s69 = sphi 0, %s66
      %s70 = sphi 0, %s69
      %s86 = sphi 0, %s70
      %s92 = sphi 0, %s94
      %s95 = sphi 0, %s92
      %s96 = sphi 0, %s95
      %s112 = sphi 0, %s96
      %s118 = sphi 0, %s120
      %s121 = sphi 0, %s118
      %s122 = sphi 0, %s121
      %s138 = sphi 0, %s122
      %s144 = sphi 0, %s146
      %s147 = sphi 0, %s144
      %s148 = sphi 0, %s147
      %s164 = sphi 0, %s148
      %s168 = sphi 0, %s168
      %s170 = sphi 0, %s168
      %s171 = sphi 0, %s170
      %s185 = sphi 0, %s171
      %s189 = sphi 0, %s189
      %s191 = sphi 0, %s189
      %s192 = sphi 0, %s191
      %s206 = sphi 0, %s192
      %s210 = sphi 0, %s210
      %s212 = sphi 0, %s210
      %s213 = sphi 0, %s212
      %s227 = sphi 0, %s213
      %s231 = sphi 0, %s231
      %s233 = sphi 0, %s231
      %s234 = sphi 0, %s233
      %s248 = sphi 0, %s234
      %s252 = sphi 0, %s252
      %s254 = sphi 0, %s252
      %s255 = sphi 0, %s254
      %s269 = sphi 0, %s255
      %s273 = sphi 0, %s273
      %s275 = sphi 0, %s273
      %s276 = sphi 0, %s275
      %s290 = sphi 0, %s276
      %s294 = sphi 0, %s294
      %s296 = sphi 0, %s294
      %s297 = sphi 0, %s296
      %s311 = sphi 0, %s297
      %s315 = sphi 0, %s315
      %s317 = sphi 0, %s315
      %s318 = sphi 0, %s317
      %s332 = sphi 0, %s318
      %s336 = sphi 0, %s336
      %s338 = sphi 0, %s336
      %s339 = sphi 0, %s338
      %s353 = sphi 0, %s339
      %s357 = sphi 0, %s357
      %s359 = sphi 0, %s357
      %s360 = sphi 0, %s359
      %s374 = sphi 0, %s360
      %s382 = sphi 0, %s384
      %s385 = sphi 0, %s382
      %s386 = sphi 0, %s385
      %s402 = sphi 0, %s386
      %s410 = sphi 0, %s412
      %s413 = sphi 0, %s410
      %s414 = sphi 0, %s413
      %s430 = sphi 0, %s414
    $region4: #{tpu_custom_call.1} parent=1 // loop_header_branch
      %45 = sbr.rel (%p43) target = $region8
    $region5: #{tpu_custom_call.1} parent=1 // loop_body
      %s47 = ssub.s32 %s42, 1
      %s48 = ssub.s32 %s42, 2
      %s55 = sadd.s32 1, %s50
      %p56 = scmp.ge.s32.totalorder %s55, 1
      %s57 = scalar_select %p56, 0, %s55
      %s58 = sadd.s32 1, %s49
      %s59 = scalar_select %p56, %s58, %s49
      %p60 = scmp.ge.s32.totalorder %s59, 2
      %s61 = scalar_select %p60, 0, %s59
      %s62 = ssub.s32 %s49, %s61
      %s63 = ssub.s32 %s50, %s57
      %s64 = sor.u32 %s62, %s63
      %p65 = scmp.eq.s32.totalorder %s64, 0
      %s67 = sadd.s32 %s66, 1
      %s68 = scalar_select %p65, %s66, %s67
      %p71 = pneg %p65
      %p72 = scmp.eq.s32.totalorder %s42, 1
      %p73 = por %p71, %p72
      %p74 = scmp.ne.s32.totalorder %s66, %s69
      %p75 = scmp.eq.s32.totalorder %s42, 0
      %p76 = por %p74, %p75
      %p77 = scmp.ne.s32.totalorder %s66, %s69
      %p78 = scmp.eq.s32.totalorder %s47, 1
      %p79 = por %p77, %p78
      %p80 = scmp.ne.s32.totalorder %s69, %s70
      %p81 = scmp.eq.s32.totalorder %s47, 0
      %p82 = por %p80, %p81
      %p83 = scmp.ne.s32.totalorder %s69, %s70
      %p84 = scmp.eq.s32.totalorder %s48, 1
      %p85 = por %p83, %p84
      %p87 = scmp.ne.s32.totalorder %s70, %s86
      %p88 = scmp.eq.s32.totalorder %s48, 0
      %p89 = por %p87, %p88
      %s90 = ssub.s32 %s49, %s61
      %p91 = scmp.eq.s32.totalorder %s90, 0
      %s93 = sadd.s32 %s92, 1
      %s94 = scalar_select %p91, %s92, %s93
      %p97 = pneg %p91
      %p98 = scmp.eq.s32.totalorder %s42, 1
      %p99 = por %p97, %p98
      %p100 = scmp.ne.s32.totalorder %s92, %s95
      %p101 = scmp.eq.s32.totalorder %s42, 0
      %p102 = por %p100, %p101
      %p103 = scmp.ne.s32.totalorder %s92, %s95
      %p104 = scmp.eq.s32.totalorder %s47, 1
      %p105 = por %p103, %p104
      %p106 = scmp.ne.s32.totalorder %s95, %s96
      %p107 = scmp.eq.s32.totalorder %s47, 0
      %p108 = por %p106, %p107
      %p109 = scmp.ne.s32.totalorder %s95, %s96
      %p110 = scmp.eq.s32.totalorder %s48, 1
      %p111 = por %p109, %p110
      %p113 = scmp.ne.s32.totalorder %s96, %s112
      %p114 = scmp.eq.s32.totalorder %s48, 0
      %p115 = por %p113, %p114
      %s116 = ssub.s32 %s49, %s61
      %p117 = scmp.eq.s32.totalorder %s116, 0
      %s119 = sadd.s32 %s118, 1
      %s120 = scalar_select %p117, %s118, %s119
      %p123 = pneg %p117
      %p124 = scmp.eq.s32.totalorder %s42, 1
      %p125 = por %p123, %p124
      %p126 = scmp.ne.s32.totalorder %s118, %s121
      %p127 = scmp.eq.s32.totalorder %s42, 0
      %p128 = por %p126, %p127
      %p129 = scmp.ne.s32.totalorder %s118, %s121
      %p130 = scmp.eq.s32.totalorder %s47, 1
      %p131 = por %p129, %p130
      %p132 = scmp.ne.s32.totalorder %s121, %s122
      %p133 = scmp.eq.s32.totalorder %s47, 0
      %p134 = por %p132, %p133
      %p135 = scmp.ne.s32.totalorder %s121, %s122
      %p136 = scmp.eq.s32.totalorder %s48, 1
      %p137 = por %p135, %p136
      %p139 = scmp.ne.s32.totalorder %s122, %s138
      %p140 = scmp.eq.s32.totalorder %s48, 0
      %p141 = por %p139, %p140
      %s142 = ssub.s32 %s49, %s61
      %p143 = scmp.eq.s32.totalorder %s142, 0
      %s145 = sadd.s32 %s144, 1
      %s146 = scalar_select %p143, %s144, %s145
      %p149 = pneg %p143
      %p150 = scmp.eq.s32.totalorder %s42, 1
      %p151 = por %p149, %p150
      %p152 = scmp.ne.s32.totalorder %s144, %s147
      %p153 = scmp.eq.s32.totalorder %s42, 0
      %p154 = por %p152, %p153
      %p155 = scmp.ne.s32.totalorder %s144, %s147
      %p156 = scmp.eq.s32.totalorder %s47, 1
      %p157 = por %p155, %p156
      %p158 = scmp.ne.s32.totalorder %s147, %s148
      %p159 = scmp.eq.s32.totalorder %s47, 0
      %p160 = por %p158, %p159
      %p161 = scmp.ne.s32.totalorder %s147, %s148
      %p162 = scmp.eq.s32.totalorder %s48, 1
      %p163 = por %p161, %p162
      %p165 = scmp.ne.s32.totalorder %s148, %s164
      %p166 = scmp.eq.s32.totalorder %s48, 0
      %p167 = por %p165, %p166
      %s169 = sadd.s32 %s168, 1
      %p172 = scmp.eq.s32.totalorder %s42, 1
      %p173 = scmp.ne.s32.totalorder %s168, %s170
      %p174 = scmp.eq.s32.totalorder %s42, 0
      %p175 = por %p173, %p174
      %p176 = scmp.ne.s32.totalorder %s168, %s170
      %p177 = scmp.eq.s32.totalorder %s47, 1
      %p178 = por %p176, %p177
      %p179 = scmp.ne.s32.totalorder %s170, %s171
      %p180 = scmp.eq.s32.totalorder %s47, 0
      %p181 = por %p179, %p180
      %p182 = scmp.ne.s32.totalorder %s170, %s171
      %p183 = scmp.eq.s32.totalorder %s48, 1
      %p184 = por %p182, %p183
      %p186 = scmp.ne.s32.totalorder %s171, %s185
      %p187 = scmp.eq.s32.totalorder %s48, 0
      %p188 = por %p186, %p187
      %s190 = sadd.s32 %s189, 1
      %p193 = scmp.eq.s32.totalorder %s42, 1
      %p194 = scmp.ne.s32.totalorder %s189, %s191
      %p195 = scmp.eq.s32.totalorder %s42, 0
      %p196 = por %p194, %p195
      %p197 = scmp.ne.s32.totalorder %s189, %s191
      %p198 = scmp.eq.s32.totalorder %s47, 1
      %p199 = por %p197, %p198
      %p200 = scmp.ne.s32.totalorder %s191, %s192
      %p201 = scmp.eq.s32.totalorder %s47, 0
      %p202 = por %p200, %p201
      %p203 = scmp.ne.s32.totalorder %s191, %s192
      %p204 = scmp.eq.s32.totalorder %s48, 1
      %p205 = por %p203, %p204
      %p207 = scmp.ne.s32.totalorder %s192, %s206
      %p208 = scmp.eq.s32.totalorder %s48, 0
      %p209 = por %p207, %p208
      %s211 = sadd.s32 %s210, 1
      %p214 = scmp.eq.s32.totalorder %s42, 1
      %p215 = scmp.ne.s32.totalorder %s210, %s212
      %p216 = scmp.eq.s32.totalorder %s42, 0
      %p217 = por %p215, %p216
      %p218 = scmp.ne.s32.totalorder %s210, %s212
      %p219 = scmp.eq.s32.totalorder %s47, 1
      %p220 = por %p218, %p219
      %p221 = scmp.ne.s32.totalorder %s212, %s213
      %p222 = scmp.eq.s32.totalorder %s47, 0
      %p223 = por %p221, %p222
      %p224 = scmp.ne.s32.totalorder %s212, %s213
      %p225 = scmp.eq.s32.totalorder %s48, 1
      %p226 = por %p224, %p225
      %p228 = scmp.ne.s32.totalorder %s213, %s227
      %p229 = scmp.eq.s32.totalorder %s48, 0
      %p230 = por %p228, %p229
      %s232 = sadd.s32 %s231, 1
      %p235 = scmp.eq.s32.totalorder %s42, 1
      %p236 = scmp.ne.s32.totalorder %s231, %s233
      %p237 = scmp.eq.s32.totalorder %s42, 0
      %p238 = por %p236, %p237
      %p239 = scmp.ne.s32.totalorder %s231, %s233
      %p240 = scmp.eq.s32.totalorder %s47, 1
      %p241 = por %p239, %p240
      %p242 = scmp.ne.s32.totalorder %s233, %s234
      %p243 = scmp.eq.s32.totalorder %s47, 0
      %p244 = por %p242, %p243
      %p245 = scmp.ne.s32.totalorder %s233, %s234
      %p246 = scmp.eq.s32.totalorder %s48, 1
      %p247 = por %p245, %p246
      %p249 = scmp.ne.s32.totalorder %s234, %s248
      %p250 = scmp.eq.s32.totalorder %s48, 0
      %p251 = por %p249, %p250
      %s253 = sadd.s32 %s252, 1
      %p256 = scmp.eq.s32.totalorder %s42, 1
      %p257 = scmp.ne.s32.totalorder %s252, %s254
      %p258 = scmp.eq.s32.totalorder %s42, 0
      %p259 = por %p257, %p258
      %p260 = scmp.ne.s32.totalorder %s252, %s254
      %p261 = scmp.eq.s32.totalorder %s47, 1
      %p262 = por %p260, %p261
      %p263 = scmp.ne.s32.totalorder %s254, %s255
      %p264 = scmp.eq.s32.totalorder %s47, 0
      %p265 = por %p263, %p264
      %p266 = scmp.ne.s32.totalorder %s254, %s255
      %p267 = scmp.eq.s32.totalorder %s48, 1
      %p268 = por %p266, %p267
      %p270 = scmp.ne.s32.totalorder %s255, %s269
      %p271 = scmp.eq.s32.totalorder %s48, 0
      %p272 = por %p270, %p271
      %s274 = sadd.s32 %s273, 1
      %p277 = scmp.eq.s32.totalorder %s42, 1
      %p278 = scmp.ne.s32.totalorder %s273, %s275
      %p279 = scmp.eq.s32.totalorder %s42, 0
      %p280 = por %p278, %p279
      %p281 = scmp.ne.s32.totalorder %s273, %s275
      %p282 = scmp.eq.s32.totalorder %s47, 1
      %p283 = por %p281, %p282
      %p284 = scmp.ne.s32.totalorder %s275, %s276
      %p285 = scmp.eq.s32.totalorder %s47, 0
      %p286 = por %p284, %p285
      %p287 = scmp.ne.s32.totalorder %s275, %s276
      %p288 = scmp.eq.s32.totalorder %s48, 1
      %p289 = por %p287, %p288
      %p291 = scmp.ne.s32.totalorder %s276, %s290
      %p292 = scmp.eq.s32.totalorder %s48, 0
      %p293 = por %p291, %p292
      %s295 = sadd.s32 %s294, 1
      %p298 = scmp.eq.s32.totalorder %s42, 1
      %p299 = scmp.ne.s32.totalorder %s294, %s296
      %p300 = scmp.eq.s32.totalorder %s42, 0
      %p301 = por %p299, %p300
      %p302 = scmp.ne.s32.totalorder %s294, %s296
      %p303 = scmp.eq.s32.totalorder %s47, 1
      %p304 = por %p302, %p303
      %p305 = scmp.ne.s32.totalorder %s296, %s297
      %p306 = scmp.eq.s32.totalorder %s47, 0
      %p307 = por %p305, %p306
      %p308 = scmp.ne.s32.totalorder %s296, %s297
      %p309 = scmp.eq.s32.totalorder %s48, 1
      %p310 = por %p308, %p309
      %p312 = scmp.ne.s32.totalorder %s297, %s311
      %p313 = scmp.eq.s32.totalorder %s48, 0
      %p314 = por %p312, %p313
      %s316 = sadd.s32 %s315, 1
      %p319 = scmp.eq.s32.totalorder %s42, 1
      %p320 = scmp.ne.s32.totalorder %s315, %s317
      %p321 = scmp.eq.s32.totalorder %s42, 0
      %p322 = por %p320, %p321
      %p323 = scmp.ne.s32.totalorder %s315, %s317
      %p324 = scmp.eq.s32.totalorder %s47, 1
      %p325 = por %p323, %p324
      %p326 = scmp.ne.s32.totalorder %s317, %s318
      %p327 = scmp.eq.s32.totalorder %s47, 0
      %p328 = por %p326, %p327
      %p329 = scmp.ne.s32.totalorder %s317, %s318
      %p330 = scmp.eq.s32.totalorder %s48, 1
      %p331 = por %p329, %p330
      %p333 = scmp.ne.s32.totalorder %s318, %s332
      %p334 = scmp.eq.s32.totalorder %s48, 0
      %p335 = por %p333, %p334
      %s337 = sadd.s32 %s336, 1
      %p340 = scmp.eq.s32.totalorder %s42, 1
      %p341 = scmp.ne.s32.totalorder %s336, %s338
      %p342 = scmp.eq.s32.totalorder %s42, 0
      %p343 = por %p341, %p342
      %p344 = scmp.ne.s32.totalorder %s336, %s338
      %p345 = scmp.eq.s32.totalorder %s47, 1
      %p346 = por %p344, %p345
      %p347 = scmp.ne.s32.totalorder %s338, %s339
      %p348 = scmp.eq.s32.totalorder %s47, 0
      %p349 = por %p347, %p348
      %p350 = scmp.ne.s32.totalorder %s338, %s339
      %p351 = scmp.eq.s32.totalorder %s48, 1
      %p352 = por %p350, %p351
      %p354 = scmp.ne.s32.totalorder %s339, %s353
      %p355 = scmp.eq.s32.totalorder %s48, 0
      %p356 = por %p354, %p355
      %s358 = sadd.s32 %s357, 1
      %p361 = scmp.eq.s32.totalorder %s42, 1
      %p362 = scmp.ne.s32.totalorder %s357, %s359
      %p363 = scmp.eq.s32.totalorder %s42, 0
      %p364 = por %p362, %p363
      %p365 = scmp.ne.s32.totalorder %s357, %s359
      %p366 = scmp.eq.s32.totalorder %s47, 1
      %p367 = por %p365, %p366
      %p368 = scmp.ne.s32.totalorder %s359, %s360
      %p369 = scmp.eq.s32.totalorder %s47, 0
      %p370 = por %p368, %p369
      %p371 = scmp.ne.s32.totalorder %s359, %s360
      %p372 = scmp.eq.s32.totalorder %s48, 1
      %p373 = por %p371, %p372
      %p375 = scmp.ne.s32.totalorder %s360, %s374
      %p376 = scmp.eq.s32.totalorder %s48, 0
      %p377 = por %p375, %p376
      %s378 = ssub.s32 %s49, %s61
      %s379 = ssub.s32 %s50, %s57
      %s380 = sor.u32 %s378, %s379
      %p381 = scmp.eq.s32.totalorder %s380, 0
      %s383 = sadd.s32 %s382, 1
      %s384 = scalar_select %p381, %s382, %s383
      %p387 = pneg %p381
      %p388 = scmp.eq.s32.totalorder %s42, 1
      %p389 = por %p387, %p388
      %p390 = scmp.ne.s32.totalorder %s382, %s385
      %p391 = scmp.eq.s32.totalorder %s42, 0
      %p392 = por %p390, %p391
      %p393 = scmp.ne.s32.totalorder %s382, %s385
      %p394 = scmp.eq.s32.totalorder %s47, 1
      %p395 = por %p393, %p394
      %p396 = scmp.ne.s32.totalorder %s385, %s386
      %p397 = scmp.eq.s32.totalorder %s47, 0
      %p398 = por %p396, %p397
      %p399 = scmp.ne.s32.totalorder %s385, %s386
      %p400 = scmp.eq.s32.totalorder %s48, 1
      %p401 = por %p399, %p400
      %p403 = scmp.ne.s32.totalorder %s386, %s402
      %p404 = scmp.eq.s32.totalorder %s48, 0
      %p405 = por %p403, %p404
      %s406 = ssub.s32 %s49, %s61
      %s407 = ssub.s32 %s50, %s57
      %s408 = sor.u32 %s406, %s407
      %p409 = scmp.eq.s32.totalorder %s408, 0
      %s411 = sadd.s32 %s410, 1
      %s412 = scalar_select %p409, %s410, %s411
      %p415 = pneg %p409
      %p416 = scmp.eq.s32.totalorder %s42, 1
      %p417 = por %p415, %p416
      %p418 = scmp.ne.s32.totalorder %s410, %s413
      %p419 = scmp.eq.s32.totalorder %s42, 0
      %p420 = por %p418, %p419
      %p421 = scmp.ne.s32.totalorder %s410, %s413
      %p422 = scmp.eq.s32.totalorder %s47, 1
      %p423 = por %p421, %p422
      %p424 = scmp.ne.s32.totalorder %s413, %s414
      %p425 = scmp.eq.s32.totalorder %s47, 0
      %p426 = por %p424, %p425
      %p427 = scmp.ne.s32.totalorder %s413, %s414
      %p428 = scmp.eq.s32.totalorder %s48, 1
      %p429 = por %p427, %p428
      %p431 = scmp.ne.s32.totalorder %s414, %s430
      %p432 = scmp.eq.s32.totalorder %s48, 0
      %p433 = por %p431, %p432
      %p434 = scmp.le.s32.totalorder 1, %s42
      %p435 = scmp.lt.s32.totalorder %s42, 3
      %p436 = pnand %p434, %p435
      %p437 = pneg %p436
      // Predicated region
      $region9: #{tpu_custom_call.1} parent=5 // pred_check
        _
      $region10: #{tpu_custom_call.1} parent=5 // pred_check_branch
        %439 = sbr.rel (%p436) target = $region12
      $region11: #{tpu_custom_call.1} parent=5 // pred_region
        %s440 = ssub.s32 %s42, 1
        // Predicated region
        $region13: #{tpu_custom_call.1} parent=11 // pred_check
          %p441 = pneg %p181
        $region14: #{tpu_custom_call.1} parent=11 // pred_check_branch
          %443 = sbr.rel (%p441) target = $region16
        $region15: #{tpu_custom_call.1} parent=11 // pred_region
          %s445 = ssub.s32 256, 256
          %446 = vsyncadd [#allocation12], %s445
          %s447 = sshll.u32 [#allocation13], 4
          %s448 = int_to_ptr.vmem [resolvable:$true] %s447
          %453 = dma.hbm_to_vmem [thread:$0]  %s4, 256, %s448, [#allocation12], 64, 64, 4
        $region16: #{tpu_custom_call.1} parent=11 // pred_fallthru
          _
        // Predicated region
        $region17: #{tpu_custom_call.1} parent=11 // pred_check
          %p454 = pneg %p202
        $region18: #{tpu_custom_call.1} parent=11 // pred_check_branch
          %456 = sbr.rel (%p454) target = $region20
        $region19: #{tpu_custom_call.1} parent=11 // pred_region
          %s458 = ssub.s32 16, 16
          %459 = vsyncadd [#allocation15], %s458
          %s461 = sshll.u32 [#allocation14], 4
          %s462 = int_to_ptr.vmem [resolvable:$true] %s461
          %464 = dma.hbm_to_vmem [thread:$0]  %s5, 16, %s462, [#allocation15]
        $region20: #{tpu_custom_call.1} parent=11 // pred_fallthru
          _
        // Predicated region
        $region21: #{tpu_custom_call.1} parent=11 // pred_check
          %p465 = pneg %p223
        $region22: #{tpu_custom_call.1} parent=11 // pred_check_branch
          %467 = sbr.rel (%p465) target = $region24
        $region23: #{tpu_custom_call.1} parent=11 // pred_region
          %s469 = ssub.s32 256, 256
          %470 = vsyncadd [#allocation15], %s469
          %s471 = sshll.u32 [#allocation16], 4
          %s472 = int_to_ptr.vmem [resolvable:$true] %s471
          %477 = dma.hbm_to_vmem [thread:$0]  %s6, 256, %s472, [#allocation15], 64, 64, 4
        $region24: #{tpu_custom_call.1} parent=11 // pred_fallthru
          _
        // Predicated region
        $region25: #{tpu_custom_call.1} parent=11 // pred_check
          %p478 = pneg %p244
        $region26: #{tpu_custom_call.1} parent=11 // pred_check_branch
          %480 = sbr.rel (%p478) target = $region28
        $region27: #{tpu_custom_call.1} parent=11 // pred_region
          %s482 = ssub.s32 16, 16
          %483 = vsyncadd [#allocation18], %s482
          %s485 = sshll.u32 [#allocation17], 4
          %s486 = int_to_ptr.vmem [resolvable:$true] %s485
          %488 = dma.hbm_to_vmem [thread:$0]  %s7, 16, %s486, [#allocation18]
        $region28: #{tpu_custom_call.1} parent=11 // pred_fallthru
          _
        // Predicated region
        $region29: #{tpu_custom_call.1} parent=11 // pred_check
          %p489 = pneg %p265
        $region30: #{tpu_custom_call.1} parent=11 // pred_check_branch
          %491 = sbr.rel (%p489) target = $region32
        $region31: #{tpu_custom_call.1} parent=11 // pred_region
          %s493 = ssub.s32 256, 256
          %494 = vsyncadd [#allocation18], %s493
          %s495 = sshll.u32 [#allocation19], 4
          %s496 = int_to_ptr.vmem [resolvable:$true] %s495
          %501 = dma.hbm_to_vmem [thread:$0]  %s8, 256, %s496, [#allocation18], 64, 64, 4
        $region32: #{tpu_custom_call.1} parent=11 // pred_fallthru
          _
        // Predicated region
        $region33: #{tpu_custom_call.1} parent=11 // pred_check
          %p502 = pneg %p286
        $region34: #{tpu_custom_call.1} parent=11 // pred_check_branch
          %504 = sbr.rel (%p502) target = $region36
        $region35: #{tpu_custom_call.1} parent=11 // pred_region
          %s506 = ssub.s32 16, 16
          %507 = vsyncadd [#allocation21], %s506
          %s509 = sshll.u32 [#allocation20], 4
          %s510 = int_to_ptr.vmem [resolvable:$true] %s509
          %512 = dma.hbm_to_vmem [thread:$0]  %s9, 16, %s510, [#allocation21]
        $region36: #{tpu_custom_call.1} parent=11 // pred_fallthru
          _
        // Predicated region
        $region37: #{tpu_custom_call.1} parent=11 // pred_check
          %p513 = pneg %p307
        $region38: #{tpu_custom_call.1} parent=11 // pred_check_branch
          %515 = sbr.rel (%p513) target = $region40
        $region39: #{tpu_custom_call.1} parent=11 // pred_region
          %s517 = ssub.s32 512, 512
          %518 = vsyncadd [#allocation21], %s517
          %s519 = sshll.u32 [#allocation22], 4
          %s520 = int_to_ptr.vmem [resolvable:$true] %s519
          %525 = dma.hbm_to_vmem [thread:$0]  %s10, 512, %s520, [#allocation21], 64, 64, 4
        $region40: #{tpu_custom_call.1} parent=11 // pred_fallthru
          _
        // Predicated region
        $region41: #{tpu_custom_call.1} parent=11 // pred_check
          %p526 = pneg %p328
        $region42: #{tpu_custom_call.1} parent=11 // pred_check_branch
          %528 = sbr.rel (%p526) target = $region44
        $region43: #{tpu_custom_call.1} parent=11 // pred_region
          %s530 = ssub.s32 16, 16
          %531 = vsyncadd [#allocation24], %s530
          %s533 = sshll.u32 [#allocation23], 4
          %s534 = int_to_ptr.vmem [resolvable:$true] %s533
          %536 = dma.hbm_to_vmem [thread:$0]  %s11, 16, %s534, [#allocation24]
        $region44: #{tpu_custom_call.1} parent=11 // pred_fallthru
          _
        // Predicated region
        $region45: #{tpu_custom_call.1} parent=11 // pred_check
          %p537 = pneg %p349
        $region46: #{tpu_custom_call.1} parent=11 // pred_check_branch
          %539 = sbr.rel (%p537) target = $region48
        $region47: #{tpu_custom_call.1} parent=11 // pred_region
          %s541 = ssub.s32 16, 16
          %542 = vsyncadd [#allocation24], %s541
          %s544 = sshll.u32 [#allocation25], 4
          %s545 = int_to_ptr.vmem [resolvable:$true] %s544
          %547 = dma.hbm_to_vmem [thread:$0]  %s12, 16, %s545, [#allocation24]
        $region48: #{tpu_custom_call.1} parent=11 // pred_fallthru
          _
        // Predicated region
        $region49: #{tpu_custom_call.1} parent=11 // pred_check
          %p548 = pneg %p370
        $region50: #{tpu_custom_call.1} parent=11 // pred_check_branch
          %550 = sbr.rel (%p548) target = $region52
        $region51: #{tpu_custom_call.1} parent=11 // pred_region
          %s552 = ssub.s32 16, 16
          %553 = vsyncadd [#allocation27], %s552
          %s555 = sshll.u32 [#allocation26], 4
          %s556 = int_to_ptr.vmem [resolvable:$true] %s555
          %558 = dma.hbm_to_vmem [thread:$0]  %s13, 16, %s556, [#allocation27]
        $region52: #{tpu_custom_call.1} parent=11 // pred_fallthru
          _
      $region12: #{tpu_custom_call.1} parent=5 // pred_fallthru
        _
      %p559 = scmp.lt.s32.totalorder %s42, 2
      // Predicated region
      $region53: #{tpu_custom_call.1} parent=5 // pred_check
        %p560 = pneg %p559
      $region54: #{tpu_custom_call.1} parent=5 // pred_check_branch
        %562 = sbr.rel (%p560) target = $region56
      $region55: #{tpu_custom_call.1} parent=5 // pred_region
        // Predicated region
        $region57: #{tpu_custom_call.1} parent=55 // pred_check
          %p563 = pneg %p76
        $region58: #{tpu_custom_call.1} parent=55 // pred_check_branch
          %565 = sbr.rel (%p563) target = $region60
        $region59: #{tpu_custom_call.1} parent=55 // pred_region
          %s566 = sand.u32 %s66, 1
          %s567 = scalar_lea.sflag [#allocation6], %s566
          %s568 = sand.u32 %s66, 1
          %s569 = smul.addr %s568, 8
          %s570 = scalar_lea.vmem [#allocation5], %s569
          %s572 = ssub.s32 128, 128
          %573 = vsyncadd %s567, %s572
          %s574 = sadd.s32 %s50, %s49
          %s575 = smul.addr %s574, 128
          %s576 = scalar_lea.hbm %s0, %s575
          %s578 = sshll.u32 %s570, 4
          %s579 = int_to_ptr.vmem [resolvable:$true] %s578
          %581 = dma.hbm_to_vmem [thread:$0]  %s576, 128, %s579, %s567
        $region60: #{tpu_custom_call.1} parent=55 // pred_fallthru
          _
        // Predicated region
        $region61: #{tpu_custom_call.1} parent=55 // pred_check
          %p582 = pneg %p102
        $region62: #{tpu_custom_call.1} parent=55 // pred_check_branch
          %584 = sbr.rel (%p582) target = $region64
        $region63: #{tpu_custom_call.1} parent=55 // pred_region
          %s585 = sand.u32 %s42, 1
          %s586 = scalar_lea.sflag [#allocation9], %s585
          %s587 = sand.u32 %s92, 1
          %s588 = smul.addr %s587, 4
          %s589 = scalar_lea.vmem [#allocation8], %s588
          %s591 = ssub.s32 64, 64
          %592 = vsyncadd %s586, %s591
          %s593 = smul.addr %s49, 64
          %s594 = scalar_lea.hbm %s1, %s593
          %s596 = sshll.u32 %s589, 4
          %s597 = int_to_ptr.vmem [resolvable:$true] %s596
          %599 = dma.hbm_to_vmem [thread:$0]  %s594, 64, %s597, %s586
        $region64: #{tpu_custom_call.1} parent=55 // pred_fallthru
          _
        // Predicated region
        $region65: #{tpu_custom_call.1} parent=55 // pred_check
          %p600 = pneg %p128
        $region66: #{tpu_custom_call.1} parent=55 // pred_check_branch
          %602 = sbr.rel (%p600) target = $region68
        $region67: #{tpu_custom_call.1} parent=55 // pred_region
          %s603 = sand.u32 %s42, 1
          %s604 = scalar_lea.sflag [#allocation9], %s603
          %s605 = sand.u32 %s118, 1
          %s606 = smul.addr %s605, 4
          %s607 = scalar_lea.vmem [#allocation10], %s606
          %s609 = ssub.s32 64, 64
          %610 = vsyncadd %s604, %s609
          %s611 = smul.addr %s49, 64
          %s612 = scalar_lea.hbm %s2, %s611
          %s614 = sshll.u32 %s607, 4
          %s615 = int_to_ptr.vmem [resolvable:$true] %s614
          %617 = dma.hbm_to_vmem [thread:$0]  %s612, 64, %s615, %s604
        $region68: #{tpu_custom_call.1} parent=55 // pred_fallthru
          _
        // Predicated region
        $region69: #{tpu_custom_call.1} parent=55 // pred_check
          %p618 = pneg %p154
        $region70: #{tpu_custom_call.1} parent=55 // pred_check_branch
          %620 = sbr.rel (%p618) target = $region72
        $region71: #{tpu_custom_call.1} parent=55 // pred_region
          %s621 = sand.u32 %s42, 1
          %s622 = scalar_lea.sflag [#allocation12], %s621
          %s623 = sand.u32 %s144, 1
          %s624 = scalar_lea.vmem [#allocation11], %s623
          %s626 = ssub.s32 16, 16
          %627 = vsyncadd %s622, %s626
          %s628 = smul.addr %s49, 16
          %s629 = scalar_lea.hbm %s3, %s628
          %s631 = sshll.u32 %s624, 4
          %s632 = int_to_ptr.vmem [resolvable:$true] %s631
          %634 = dma.hbm_to_vmem [thread:$0]  %s629, 16, %s632, %s622
        $region72: #{tpu_custom_call.1} parent=55 // pred_fallthru
          _
      $region56: #{tpu_custom_call.1} parent=5 // pred_fallthru
        _
      %p635 = scmp.le.s32.totalorder 1, %s42
      %p636 = scmp.lt.s32.totalorder %s42, 3
      %p637 = pnand %p635, %p636
      %p638 = pneg %p637
      // Predicated region
      $region73: #{tpu_custom_call.1} parent=5 // pred_check
        _
      $region74: #{tpu_custom_call.1} parent=5 // pred_check_branch
        %640 = sbr.rel (%p637) target = $region76
      $region75: #{tpu_custom_call.1} parent=5 // pred_region
        %s641 = ssub.s32 %s42, 1
        %s642 = sand.u32 %s69, 1
        %s643 = scalar_lea.sflag [#allocation6], %s642
        %s644 = sand.u32 %s69, 1
        %s645 = smul.addr %s644, 8
        %s646 = scalar_lea.vmem [#allocation5], %s645
        // Predicated region
        $region77: #{tpu_custom_call.1} parent=75 // pred_check
          %p647 = pneg %p82
        $region78: #{tpu_custom_call.1} parent=75 // pred_check_branch
          %649 = sbr.rel (%p647) target = $region80
        $region79: #{tpu_custom_call.1} parent=75 // pred_region
          %650 = dma.done %s643, 128
        $region80: #{tpu_custom_call.1} parent=75 // pred_fallthru
          _
        %s651 = sand.u32 %s47, 1
        %s652 = scalar_lea.sflag [#allocation9], %s651
        %s653 = sand.u32 %s95, 1
        %s654 = smul.addr %s653, 4
        %s655 = scalar_lea.vmem [#allocation8], %s654
        // Predicated region
        $region81: #{tpu_custom_call.1} parent=75 // pred_check
          %p656 = pneg %p108
        $region82: #{tpu_custom_call.1} parent=75 // pred_check_branch
          %658 = sbr.rel (%p656) target = $region84
        $region83: #{tpu_custom_call.1} parent=75 // pred_region
          %659 = dma.done %s652, 64
        $region84: #{tpu_custom_call.1} parent=75 // pred_fallthru
          _
        %s660 = sand.u32 %s47, 1
        %s661 = scalar_lea.sflag [#allocation9], %s660
        %s662 = sand.u32 %s121, 1
        %s663 = smul.addr %s662, 4
        %s664 = scalar_lea.vmem [#allocation10], %s663
        // Predicated region
        $region85: #{tpu_custom_call.1} parent=75 // pred_check
          %p665 = pneg %p134
        $region86: #{tpu_custom_call.1} parent=75 // pred_check_branch
          %667 = sbr.rel (%p665) target = $region88
        $region87: #{tpu_custom_call.1} parent=75 // pred_region
          %668 = dma.done %s661, 64
        $region88: #{tpu_custom_call.1} parent=75 // pred_fallthru
          _
        %s669 = sand.u32 %s47, 1
        %s670 = scalar_lea.sflag [#allocation12], %s669
        %s671 = sand.u32 %s147, 1
        %s672 = scalar_lea.vmem [#allocation11], %s671
        // Predicated region
        $region89: #{tpu_custom_call.1} parent=75 // pred_check
          %p673 = pneg %p160
        $region90: #{tpu_custom_call.1} parent=75 // pred_check_branch
          %675 = sbr.rel (%p673) target = $region92
        $region91: #{tpu_custom_call.1} parent=75 // pred_region
          %676 = dma.done %s670, 16
        $region92: #{tpu_custom_call.1} parent=75 // pred_fallthru
          _
        // Predicated region
        $region93: #{tpu_custom_call.1} parent=75 // pred_check
          %p677 = pneg %p181
        $region94: #{tpu_custom_call.1} parent=75 // pred_check_branch
          %679 = sbr.rel (%p677) target = $region96
        $region95: #{tpu_custom_call.1} parent=75 // pred_region
          %680 = dma.done [#allocation12], 256
        $region96: #{tpu_custom_call.1} parent=75 // pred_fallthru
          _
        // Predicated region
        $region97: #{tpu_custom_call.1} parent=75 // pred_check
          %p681 = pneg %p202
        $region98: #{tpu_custom_call.1} parent=75 // pred_check_branch
          %683 = sbr.rel (%p681) target = $region100
        $region99: #{tpu_custom_call.1} parent=75 // pred_region
          %684 = dma.done [#allocation15], 16
        $region100: #{tpu_custom_call.1} parent=75 // pred_fallthru
          _
        // Predicated region
        $region101: #{tpu_custom_call.1} parent=75 // pred_check
          %p685 = pneg %p223
        $region102: #{tpu_custom_call.1} parent=75 // pred_check_branch
          %687 = sbr.rel (%p685) target = $region104
        $region103: #{tpu_custom_call.1} parent=75 // pred_region
          %688 = dma.done [#allocation15], 256
        $region104: #{tpu_custom_call.1} parent=75 // pred_fallthru
          _
        // Predicated region
        $region105: #{tpu_custom_call.1} parent=75 // pred_check
          %p689 = pneg %p244
        $region106: #{tpu_custom_call.1} parent=75 // pred_check_branch
          %691 = sbr.rel (%p689) target = $region108
        $region107: #{tpu_custom_call.1} parent=75 // pred_region
          %692 = dma.done [#allocation18], 16
        $region108: #{tpu_custom_call.1} parent=75 // pred_fallthru
          _
        // Predicated region
        $region109: #{tpu_custom_call.1} parent=75 // pred_check
          %p693 = pneg %p265
        $region110: #{tpu_custom_call.1} parent=75 // pred_check_branch
          %695 = sbr.rel (%p693) target = $region112
        $region111: #{tpu_custom_call.1} parent=75 // pred_region
          %696 = dma.done [#allocation18], 256
        $region112: #{tpu_custom_call.1} parent=75 // pred_fallthru
          _
        // Predicated region
        $region113: #{tpu_custom_call.1} parent=75 // pred_check
          %p697 = pneg %p286
        $region114: #{tpu_custom_call.1} parent=75 // pred_check_branch
          %699 = sbr.rel (%p697) target = $region116
        $region115: #{tpu_custom_call.1} parent=75 // pred_region
          %700 = dma.done [#allocation21], 16
        $region116: #{tpu_custom_call.1} parent=75 // pred_fallthru
          _
        // Predicated region
        $region117: #{tpu_custom_call.1} parent=75 // pred_check
          %p701 = pneg %p307
        $region118: #{tpu_custom_call.1} parent=75 // pred_check_branch
          %703 = sbr.rel (%p701) target = $region120
        $region119: #{tpu_custom_call.1} parent=75 // pred_region
          %704 = dma.done [#allocation21], 512
        $region120: #{tpu_custom_call.1} parent=75 // pred_fallthru
          _
        // Predicated region
        $region121: #{tpu_custom_call.1} parent=75 // pred_check
          %p705 = pneg %p328
        $region122: #{tpu_custom_call.1} parent=75 // pred_check_branch
          %707 = sbr.rel (%p705) target = $region124
        $region123: #{tpu_custom_call.1} parent=75 // pred_region
          %708 = dma.done [#allocation24], 16
        $region124: #{tpu_custom_call.1} parent=75 // pred_fallthru
          _
        // Predicated region
        $region125: #{tpu_custom_call.1} parent=75 // pred_check
          %p709 = pneg %p349
        $region126: #{tpu_custom_call.1} parent=75 // pred_check_branch
          %711 = sbr.rel (%p709) target = $region128
        $region127: #{tpu_custom_call.1} parent=75 // pred_region
          %712 = dma.done [#allocation24], 16
        $region128: #{tpu_custom_call.1} parent=75 // pred_fallthru
          _
        // Predicated region
        $region129: #{tpu_custom_call.1} parent=75 // pred_check
          %p713 = pneg %p370
        $region130: #{tpu_custom_call.1} parent=75 // pred_check_branch
          %715 = sbr.rel (%p713) target = $region132
        $region131: #{tpu_custom_call.1} parent=75 // pred_region
          %716 = dma.done [#allocation27], 16
        $region132: #{tpu_custom_call.1} parent=75 // pred_fallthru
          _
        %s717 = sand.u32 %s69, 1
        %s718 = scalar_lea.sflag [#allocation6], %s717
        %s719 = sand.u32 %s69, 1
        %s720 = smul.addr %s719, 8
        %s721 = scalar_lea.vmem [#allocation5], %s720
        %p722 = pneg %p82
        %p723 = pneg %p79
        %s724 = sand.u32 %s47, 1
        %s725 = scalar_lea.sflag [#allocation9], %s724
        %s726 = sand.u32 %s95, 1
        %s727 = smul.addr %s726, 4
        %s728 = scalar_lea.vmem [#allocation8], %s727
        %p729 = pneg %p108
        %p730 = pneg %p105
        %s731 = sand.u32 %s47, 1
        %s732 = scalar_lea.sflag [#allocation9], %s731
        %s733 = sand.u32 %s121, 1
        %s734 = smul.addr %s733, 4
        %s735 = scalar_lea.vmem [#allocation10], %s734
        %p736 = pneg %p134
        %p737 = pneg %p131
        %s738 = sand.u32 %s47, 1
        %s739 = scalar_lea.sflag [#allocation12], %s738
        %s740 = sand.u32 %s147, 1
        %s741 = scalar_lea.vmem [#allocation11], %s740
        %p742 = pneg %p160
        %p743 = pneg %p157
        %p744 = pneg %p181
        %p745 = pneg %p178
        %p746 = pneg %p202
        %p747 = pneg %p199
        %p748 = pneg %p223
        %p749 = pneg %p220
        %p750 = pneg %p244
        %p751 = pneg %p241
        %p752 = pneg %p265
        %p753 = pneg %p262
        %p754 = pneg %p286
        %p755 = pneg %p283
        %p756 = pneg %p307
        %p757 = pneg %p304
        %p758 = pneg %p328
        %p759 = pneg %p325
        %p760 = pneg %p349
        %p761 = pneg %p346
        %p762 = pneg %p370
        %p763 = pneg %p367
        %p764 = pneg %p398
        %p765 = pneg %p395
        %s766 = sand.u32 %s385, 1
        %s767 = scalar_lea.sflag [#allocation7], %s766
        %s768 = sand.u32 %s385, 1
        %s769 = smul.addr %s768, 8
        %s770 = scalar_lea.vmem [#allocation28], %s769
        %p771 = pneg %p426
        %p772 = pneg %p423
        %s773 = sand.u32 %s413, 1
        %s774 = scalar_lea.sflag [#allocation30], %s773
        %s775 = sand.u32 %s413, 1
        %s776 = smul.addr %s775, 8
        %s777 = scalar_lea.vmem [#allocation29], %s776
        %p779 = scmp.eq.s32.totalorder %s52, 0
        // Predicated region
        $region133: #{tpu_custom_call.1} parent=75 // pred_check
          %p780 = pneg %p779
        $region134: #{tpu_custom_call.1} parent=75 // pred_check_branch
          %782 = sbr.rel (%p780) target = $region136
        $region135: #{tpu_custom_call.1} parent=75 // pred_region
          %v783 = vld [vmem:[%s655] sm:$0xf]
          %v784 = vld [vmem:[#allocation16] sm:$0xf]
          %v785 = vld [vmem:[#allocation16 + $0x4] sm:$0xf]
          %v786 = vld [vmem:[#allocation16 + $0x8] sm:$0xf]
          %v787 = vld [vmem:[#allocation16 + $0xc] sm:$0xf]
          %v788 = vld [vmem:[#allocation17] sm:$0x1]
          %v790 = vlaneseq
          %v791 = vshrl.u32 %v790, 7
          %v792 = vsub.s32 0, %v791
          %v793 = vrot.slane %v788, %v792
          %v799 = vunpack.c.l.b16 %v784
          %v800 = vunpack.c.l.b16 %v785
          %v801 = vunpack.c.l.b16 %v786
          %v802 = vunpack.c.l.b16 %v787
          %v803 = vpack.c.b16 %v800, %v799
          %v804 = vpack.c.b16 %v802, %v801
          %vm807 = vcmask 261120
          %v809 = vsel %vm807, %v783, 0
          %811 = vmatprep.subr.bf16.mxu0 0
          %812 = vmatpush1.bf16.msra.mxu0 %v803
          %813 = vmatprep.subr.bf16.mxu0 0
          %814 = vmatpush1.bf16.msra.mxu0 %v804
          %815 = vmatprep.subr.bf16.mxu0 0
          %816 = vmatpush1.bf16.msra.mxu0 0
          %817 = vmatprep.subr.bf16.mxu0 0
          %818 = vmatpush1.bf16.msra.mxu0 0
          %819 = vmatprep.subr.bf16.mxu0 0
          %820 = vmatpush1.bf16.msra.mxu0 0
          %821 = vmatprep.subr.bf16.mxu0 0
          %822 = vmatpush1.bf16.msra.mxu0 0
          %823 = vmatprep.subr.bf16.mxu0 0
          %824 = vmatpush1.bf16.msra.mxu0 0
          %825 = vmatprep.subr.bf16.mxu0 0
          %826 = vmatpush1.bf16.msra.mxu0 0
          %827 = vmatprep.subr.bf16.mxu0 0
          %828 = vmatpush1.bf16.msra.mxu0 0
          %829 = vmatprep.subr.bf16.mxu0 0
          %830 = vmatpush1.bf16.msra.mxu0 0
          %831 = vmatprep.subr.bf16.mxu0 0
          %832 = vmatpush1.bf16.msra.mxu0 0
          %833 = vmatprep.subr.bf16.mxu0 0
          %834 = vmatpush1.bf16.msra.mxu0 0
          %835 = vmatprep.subr.bf16.mxu0 0
          %836 = vmatpush1.bf16.msra.mxu0 0
          %837 = vmatprep.subr.bf16.mxu0 0
          %838 = vmatpush1.bf16.msra.mxu0 0
          %839 = vmatprep.subr.bf16.mxu0 0
          %840 = vmatpush1.bf16.msra.mxu0 0
          %841 = vmatprep.subr.bf16.mxu0 0
          %842 = vmatpush1.bf16.msra.mxu0 0
          %843 = vmatprep.mubr.bf16.mxu0 0
          %844 = vmatmul.mubr.bf16.gmra.mrb[0].mxu0 %v809
          %v845 = vpop.f32.mrb[0].mxu0
          %v846 = vadd.f32 %v793, %v845
          %v847 = vpop.f32.mrb[0].mxu0
          %v848 = vpop.f32.mrb[0].mxu0
          %v849 = vpop.f32.mrb[0].mxu0
          %850 = vdwg.mxu0
          %v851 = vld [vmem:[%s664] sm:$0xf]
          %v852 = vld [vmem:[#allocation19] sm:$0xf]
          %v853 = vld [vmem:[#allocation19 + $0x4] sm:$0xf]
          %v854 = vld [vmem:[#allocation19 + $0x8] sm:$0xf]
          %v855 = vld [vmem:[#allocation19 + $0xc] sm:$0xf]
          %v856 = vld [vmem:[#allocation20] sm:$0x1]
          %v858 = vlaneseq
          %v859 = vshrl.u32 %v858, 7
          %v860 = vsub.s32 0, %v859
          %v861 = vrot.slane %v856, %v860
          %v867 = vunpack.c.l.b16 %v852
          %v868 = vunpack.c.l.b16 %v853
          %v869 = vunpack.c.l.b16 %v854
          %v870 = vunpack.c.l.b16 %v855
          %v871 = vpack.c.b16 %v868, %v867
          %v872 = vpack.c.b16 %v870, %v869
          %v876 = vsel %vm807, %v851, 0
          %878 = vmatprep.subr.bf16.mxu0 0
          %879 = vmatpush1.bf16.msra.mxu0 %v871
          %880 = vmatprep.subr.bf16.mxu0 0
          %881 = vmatpush1.bf16.msra.mxu0 %v872
          %882 = vmatprep.subr.bf16.mxu0 0
          %883 = vmatpush1.bf16.msra.mxu0 0
          %884 = vmatprep.subr.bf16.mxu0 0
          %885 = vmatpush1.bf16.msra.mxu0 0
          %886 = vmatprep.subr.bf16.mxu0 0
          %887 = vmatpush1.bf16.msra.mxu0 0
          %888 = vmatprep.subr.bf16.mxu0 0
          %889 = vmatpush1.bf16.msra.mxu0 0
          %890 = vmatprep.subr.bf16.mxu0 0
          %891 = vmatpush1.bf16.msra.mxu0 0
          %892 = vmatprep.subr.bf16.mxu0 0
          %893 = vmatpush1.bf16.msra.mxu0 0
          %894 = vmatprep.subr.bf16.mxu0 0
          %895 = vmatpush1.bf16.msra.mxu0 0
          %896 = vmatprep.subr.bf16.mxu0 0
          %897 = vmatpush1.bf16.msra.mxu0 0
          %898 = vmatprep.subr.bf16.mxu0 0
          %899 = vmatpush1.bf16.msra.mxu0 0
          %900 = vmatprep.subr.bf16.mxu0 0
          %901 = vmatpush1.bf16.msra.mxu0 0
          %902 = vmatprep.subr.bf16.mxu0 0
          %903 = vmatpush1.bf16.msra.mxu0 0
          %904 = vmatprep.subr.bf16.mxu0 0
          %905 = vmatpush1.bf16.msra.mxu0 0
          %906 = vmatprep.subr.bf16.mxu0 0
          %907 = vmatpush1.bf16.msra.mxu0 0
          %908 = vmatprep.subr.bf16.mxu0 0
          %909 = vmatpush1.bf16.msra.mxu0 0
          %910 = vmatprep.mubr.bf16.mxu0 0
          %911 = vmatmul.mubr.bf16.gmra.mrb[0].mxu0 %v876
          %v912 = vpop.f32.mrb[0].mxu0
          %v913 = vadd.f32 %v861, %v912
          %v914 = vpop.f32.mrb[0].mxu0
          %v915 = vpop.f32.mrb[0].mxu0
          %v916 = vpop.f32.mrb[0].mxu0
          %917 = vdwg.mxu0
          %v918 = vpack.c.bf16 %v846, %v846
          %vm919 = vcmask 519168
          %920 = vst.msk [vmem:[#allocation2] sm:$0xf] %vm919, %v918
          %v921 = vpack.c.bf16 %v913, %v913
          %922 = vst.msk [vmem:[#allocation3] sm:$0xf] %vm919, %v921
        $region136: #{tpu_custom_call.1} parent=75 // pred_fallthru
          _
        %v923 = vld [vmem:[%s646] sm:$0xff]
        %v924 = vpack.c.bf16 %v923, %v923
        %v925 = vld [vmem:[#allocation13] sm:$0xf]
        %v926 = vld [vmem:[#allocation13 + $0x4] sm:$0xf]
        %v927 = vld [vmem:[#allocation13 + $0x8] sm:$0xf]
        %v928 = vld [vmem:[#allocation13 + $0xc] sm:$0xf]
        %v929 = vld [vmem:[#allocation14] sm:$0x1]
        %v931 = vlaneseq
        %v932 = vshrl.u32 %v931, 7
        %v933 = vsub.s32 0, %v932
        %v934 = vrot.slane %v929, %v933
        %v940 = vunpack.c.l.b16 %v925
        %v941 = vunpack.c.l.b16 %v926
        %v942 = vunpack.c.l.b16 %v927
        %v943 = vunpack.c.l.b16 %v928
        %v944 = vpack.c.b16 %v941, %v940
        %v945 = vpack.c.b16 %v943, %v942
        %vm948 = vcmask 261120
        %v950 = vsel %vm948, %v924, 0
        %952 = vmatprep.subr.bf16.mxu0 0
        %953 = vmatpush1.bf16.msra.mxu0 %v944
        %954 = vmatprep.subr.bf16.mxu0 0
        %955 = vmatpush1.bf16.msra.mxu0 %v945
        %956 = vmatprep.subr.bf16.mxu0 0
        %957 = vmatpush1.bf16.msra.mxu0 0
        %958 = vmatprep.subr.bf16.mxu0 0
        %959 = vmatpush1.bf16.msra.mxu0 0
        %960 = vmatprep.subr.bf16.mxu0 0
        %961 = vmatpush1.bf16.msra.mxu0 0
        %962 = vmatprep.subr.bf16.mxu0 0
        %963 = vmatpush1.bf16.msra.mxu0 0
        %964 = vmatprep.subr.bf16.mxu0 0
        %965 = vmatpush1.bf16.msra.mxu0 0
        %966 = vmatprep.subr.bf16.mxu0 0
        %967 = vmatpush1.bf16.msra.mxu0 0
        %968 = vmatprep.subr.bf16.mxu0 0
        %969 = vmatpush1.bf16.msra.mxu0 0
        %970 = vmatprep.subr.bf16.mxu0 0
        %971 = vmatpush1.bf16.msra.mxu0 0
        %972 = vmatprep.subr.bf16.mxu0 0
        %973 = vmatpush1.bf16.msra.mxu0 0
        %974 = vmatprep.subr.bf16.mxu0 0
        %975 = vmatpush1.bf16.msra.mxu0 0
        %976 = vmatprep.subr.bf16.mxu0 0
        %977 = vmatpush1.bf16.msra.mxu0 0
        %978 = vmatprep.subr.bf16.mxu0 0
        %979 = vmatpush1.bf16.msra.mxu0 0
        %980 = vmatprep.subr.bf16.mxu0 0
        %981 = vmatpush1.bf16.msra.mxu0 0
        %982 = vmatprep.subr.bf16.mxu0 0
        %983 = vmatpush1.bf16.msra.mxu0 0
        %984 = vmatprep.mubr.bf16.mxu0 0
        %985 = vmatmul.mubr.bf16.gmra.mrb[0].mxu0 %v950
        %v986 = vpop.f32.mrb[0].mxu0
        %v987 = vadd.f32 %v934, %v986
        %v988 = vpop.f32.mrb[0].mxu0
        %v989 = vpop.f32.mrb[0].mxu0
        %v990 = vpop.f32.mrb[0].mxu0
        %991 = vdwg.mxu0
        %v992 = vld [vmem:[%s672] sm:$0x1]
        %v993 = vpack.c.bf16 %v987, %v987
        %v994 = vld [vmem:[#allocation2] sm:$0xf]
        %v995 = vld [vmem:[#allocation3] sm:$0xf]
        %v997 = vlaneseq
        %v998 = vshrl.u32 %v997, 7
        %v999 = vsub.s32 0, %v998
        %v1000 = vrot.slane %v992, %v999
        %v1003 = vsel %vm948, %v993, 0
        %v1006 = vsel %vm948, %v994, 0
        %1008 = vmatprep.subr.bf16.mxu0 0
        %1009 = vmatpush1.bf16.xpose.msra.mxu0 %v1006
        %1010 = vmatprep.subr.bf16.mxu0 0
        %1011 = vmatpush1.bf16.xpose.msra.mxu0 0
        %1012 = vmatprep.subr.bf16.mxu0 0
        %1013 = vmatpush1.bf16.xpose.msra.mxu0 0
        %1014 = vmatprep.subr.bf16.mxu0 0
        %1015 = vmatpush1.bf16.xpose.msra.mxu0 0
        %1016 = vmatprep.subr.bf16.mxu0 0
        %1017 = vmatpush1.bf16.xpose.msra.mxu0 0
        %1018 = vmatprep.subr.bf16.mxu0 0
        %1019 = vmatpush1.bf16.xpose.msra.mxu0 0
        %1020 = vmatprep.subr.bf16.mxu0 0
        %1021 = vmatpush1.bf16.xpose.msra.mxu0 0
        %1022 = vmatprep.subr.bf16.mxu0 0
        %1023 = vmatpush1.bf16.xpose.msra.mxu0 0
        %1024 = vmatprep.subr.bf16.mxu0 0
        %1025 = vmatpush1.bf16.xpose.msra.mxu0 0
        %1026 = vmatprep.subr.bf16.mxu0 0
        %1027 = vmatpush1.bf16.xpose.msra.mxu0 0
        %1028 = vmatprep.subr.bf16.mxu0 0
        %1029 = vmatpush1.bf16.xpose.msra.mxu0 0
        %1030 = vmatprep.subr.bf16.mxu0 0
        %1031 = vmatpush1.bf16.xpose.msra.mxu0 0
        %1032 = vmatprep.subr.bf16.mxu0 0
        %1033 = vmatpush1.bf16.xpose.msra.mxu0 0
        %1034 = vmatprep.subr.bf16.mxu0 0
        %1035 = vmatpush1.bf16.xpose.msra.mxu0 0
        %1036 = vmatprep.subr.bf16.mxu0 0
        %1037 = vmatpush1.bf16.xpose.msra.mxu0 0
        %1038 = vmatprep.subr.bf16.mxu0 0
        %1039 = vmatpush1.bf16.xpose.msra.mxu0 0
        %1040 = vmatprep.mubr.bf16.mxu0 0
        %1041 = vmatmul.mubr.bf16.gmra.mrb[0].mxu0 %v1003
        %v1042 = vpop.f32.mrb[0].mxu0
        %v1043 = vadd.f32 %v1000, %v1042
        %v1044 = vpop.f32.mrb[0].mxu0
        %v1045 = vpop.f32.mrb[0].mxu0
        %v1046 = vpop.f32.mrb[0].mxu0
        %1047 = vdwg.mxu0
        %vm1048 = vcmask 64512
        %v1049 = vsel %vm1048, %v1043, -inf
        %1050 = vmax.xlane.f32.xlu0 %v1049
        %v1051 = vpop.xlane.xlu0 %1050
        %v1052 = vsub.f32 %v1043, %v1051
        %v1053 = vmul.f32 %v1052, 1.442695
        %v1054 = vpow.pop %v1053
        %v1055 = vsel %vm1048, %v1054, 0.0
        %1056 = vadd.xlane.f32.xlu0 %v1055
        %v1057 = vpop.xlane.xlu0 %1056
        %v1058 = vrcp.pop %v1057
        %v1059 = vmul.f32 %v1054, %v1058
        %v1060 = vpack.c.bf16 %v1059, %v1059
        %vm1061 = vcmask 60416
        %1062 = vst.msk [vmem:[%s777] sm:$0xf] %vm1061, %v1060
        %v1064 = vsel %vm1048, %v1060, 0
        %vm1066 = vcmask 1043456
        %v1068 = vsel %vm1066, %v995, 0
        %1070 = vmatprep.subr.bf16.mxu0 0
        %1071 = vmatpush1.bf16.msra.mxu0 %v1068
        %1072 = vmatprep.subr.bf16.mxu0 0
        %1073 = vmatpush1.bf16.msra.mxu0 0
        %1074 = vmatprep.subr.bf16.mxu0 0
        %1075 = vmatpush1.bf16.msra.mxu0 0
        %1076 = vmatprep.subr.bf16.mxu0 0
        %1077 = vmatpush1.bf16.msra.mxu0 0
        %1078 = vmatprep.subr.bf16.mxu0 0
        %1079 = vmatpush1.bf16.msra.mxu0 0
        %1080 = vmatprep.subr.bf16.mxu0 0
        %1081 = vmatpush1.bf16.msra.mxu0 0
        %1082 = vmatprep.subr.bf16.mxu0 0
        %1083 = vmatpush1.bf16.msra.mxu0 0
        %1084 = vmatprep.subr.bf16.mxu0 0
        %1085 = vmatpush1.bf16.msra.mxu0 0
        %1086 = vmatprep.subr.bf16.mxu0 0
        %1087 = vmatpush1.bf16.msra.mxu0 0
        %1088 = vmatprep.subr.bf16.mxu0 0
        %1089 = vmatpush1.bf16.msra.mxu0 0
        %1090 = vmatprep.subr.bf16.mxu0 0
        %1091 = vmatpush1.bf16.msra.mxu0 0
        %1092 = vmatprep.subr.bf16.mxu0 0
        %1093 = vmatpush1.bf16.msra.mxu0 0
        %1094 = vmatprep.subr.bf16.mxu0 0
        %1095 = vmatpush1.bf16.msra.mxu0 0
        %1096 = vmatprep.subr.bf16.mxu0 0
        %1097 = vmatpush1.bf16.msra.mxu0 0
        %1098 = vmatprep.subr.bf16.mxu0 0
        %1099 = vmatpush1.bf16.msra.mxu0 0
        %1100 = vmatprep.subr.bf16.mxu0 0
        %1101 = vmatpush1.bf16.msra.mxu0 0
        %1102 = vmatprep.mubr.bf16.mxu0 0
        %1103 = vmatmul.mubr.bf16.gmra.mrb[0].mxu0 %v1064
        %v1104 = vpop.f32.mrb[0].mxu0
        %v1105 = vadd.f32 0.0, %v1104
        %v1106 = vpop.f32.mrb[0].mxu0
        %v1107 = vpop.f32.mrb[0].mxu0
        %v1108 = vpop.f32.mrb[0].mxu0
        %1109 = vdwg.mxu0
        %v1110 = vpack.c.bf16 %v1105, %v1105
        %vm1111 = vcmask 257024
        %1112 = vst.msk [vmem:[#allocation4] sm:$0xf] %vm1111, %v1110
        %v1113 = vld [vmem:[#allocation2] sm:$0xf]
        %v1114 = vld [vmem:[#allocation3] sm:$0xf]
        %1116 = vrot.lane.b32.xlu0 %v993, 96
        %v1117 = vpop.permute.xlu0 %1116
        %v1119 = vunpack.c.l.b16 %v1113
        %v1120 = vpack.c.b16 %v1119, %v1119
        %1121 = vrot.lane.b32.xlu0 %v1120, 96
        %v1122 = vpop.permute.xlu0 %1121
        %v1124 = vsel %vm948, %v1117, 0
        %v1127 = vsel %vm948, %v1122, 0
        %1129 = vmatprep.subr.bf16.mxu0 0
        %1130 = vmatpush1.bf16.xpose.msra.mxu0 %v1127
        %1131 = vmatprep.subr.bf16.mxu0 0
        %1132 = vmatpush1.bf16.xpose.msra.mxu0 0
        %1133 = vmatprep.subr.bf16.mxu0 0
        %1134 = vmatpush1.bf16.xpose.msra.mxu0 0
        %1135 = vmatprep.subr.bf16.mxu0 0
        %1136 = vmatpush1.bf16.xpose.msra.mxu0 0
        %1137 = vmatprep.subr.bf16.mxu0 0
        %1138 = vmatpush1.bf16.xpose.msra.mxu0 0
        %1139 = vmatprep.subr.bf16.mxu0 0
        %1140 = vmatpush1.bf16.xpose.msra.mxu0 0
        %1141 = vmatprep.subr.bf16.mxu0 0
        %1142 = vmatpush1.bf16.xpose.msra.mxu0 0
        %1143 = vmatprep.subr.bf16.mxu0 0
        %1144 = vmatpush1.bf16.xpose.msra.mxu0 0
        %1145 = vmatprep.subr.bf16.mxu0 0
        %1146 = vmatpush1.bf16.xpose.msra.mxu0 0
        %1147 = vmatprep.subr.bf16.mxu0 0
        %1148 = vmatpush1.bf16.xpose.msra.mxu0 0
        %1149 = vmatprep.subr.bf16.mxu0 0
        %1150 = vmatpush1.bf16.xpose.msra.mxu0 0
        %1151 = vmatprep.subr.bf16.mxu0 0
        %1152 = vmatpush1.bf16.xpose.msra.mxu0 0
        %1153 = vmatprep.subr.bf16.mxu0 0
        %1154 = vmatpush1.bf16.xpose.msra.mxu0 0
        %1155 = vmatprep.subr.bf16.mxu0 0
        %1156 = vmatpush1.bf16.xpose.msra.mxu0 0
        %1157 = vmatprep.subr.bf16.mxu0 0
        %1158 = vmatpush1.bf16.xpose.msra.mxu0 0
        %1159 = vmatprep.subr.bf16.mxu0 0
        %1160 = vmatpush1.bf16.xpose.msra.mxu0 0
        %1161 = vmatprep.mubr.bf16.mxu0 0
        %1162 = vmatmul.mubr.bf16.gmra.mrb[0].mxu0 %v1124
        %v1163 = vpop.f32.mrb[0].mxu0
        %v1164 = vadd.f32 %v1000, %v1163
        %v1165 = vpop.f32.mrb[0].mxu0
        %v1166 = vpop.f32.mrb[0].mxu0
        %v1167 = vpop.f32.mrb[0].mxu0
        %1168 = vdwg.mxu0
        %v1169 = vsel %vm1048, %v1164, -inf
        %1170 = vmax.xlane.f32.xlu0 %v1169
        %v1171 = vpop.xlane.xlu0 %1170
        %v1172 = vsub.f32 %v1164, %v1171
        %v1173 = vmul.f32 %v1172, 1.442695
        %v1174 = vpow.pop %v1173
        %v1175 = vsel %vm1048, %v1174, 0.0
        %1176 = vadd.xlane.f32.xlu0 %v1175
        %v1177 = vpop.xlane.xlu0 %1176
        %v1178 = vrcp.pop %v1177
        %v1179 = vmul.f32 %v1174, %v1178
        %v1180 = vpack.c.bf16 %v1179, %v1179
        %s1181 = scalar_lea.vmem %s777, 4 [#allocation29]
        %1182 = vst.msk [vmem:[%s1181] sm:$0xf] %vm1061, %v1180
        %v1184 = vunpack.c.l.b16 %v1114
        %v1185 = vpack.c.b16 %v1184, %v1184
        %1186 = vrot.lane.b32.xlu0 %v1185, 96
        %v1187 = vpop.permute.xlu0 %1186
        %v1189 = vsel %vm1048, %v1180, 0
        %v1192 = vsel %vm1066, %v1187, 0
        %1194 = vmatprep.subr.bf16.mxu0 0
        %1195 = vmatpush1.bf16.msra.mxu0 %v1192
        %1196 = vmatprep.subr.bf16.mxu0 0
        %1197 = vmatpush1.bf16.msra.mxu0 0
        %1198 = vmatprep.subr.bf16.mxu0 0
        %1199 = vmatpush1.bf16.msra.mxu0 0
        %1200 = vmatprep.subr.bf16.mxu0 0
        %1201 = vmatpush1.bf16.msra.mxu0 0
        %1202 = vmatprep.subr.bf16.mxu0 0
        %1203 = vmatpush1.bf16.msra.mxu0 0
        %1204 = vmatprep.subr.bf16.mxu0 0
        %1205 = vmatpush1.bf16.msra.mxu0 0
        %1206 = vmatprep.subr.bf16.mxu0 0
        %1207 = vmatpush1.bf16.msra.mxu0 0
        %1208 = vmatprep.subr.bf16.mxu0 0
        %1209 = vmatpush1.bf16.msra.mxu0 0
        %1210 = vmatprep.subr.bf16.mxu0 0
        %1211 = vmatpush1.bf16.msra.mxu0 0
        %1212 = vmatprep.subr.bf16.mxu0 0
        %1213 = vmatpush1.bf16.msra.mxu0 0
        %1214 = vmatprep.subr.bf16.mxu0 0
        %1215 = vmatpush1.bf16.msra.mxu0 0
        %1216 = vmatprep.subr.bf16.mxu0 0
        %1217 = vmatpush1.bf16.msra.mxu0 0
        %1218 = vmatprep.subr.bf16.mxu0 0
        %1219 = vmatpush1.bf16.msra.mxu0 0
        %1220 = vmatprep.subr.bf16.mxu0 0
        %1221 = vmatpush1.bf16.msra.mxu0 0
        %1222 = vmatprep.subr.bf16.mxu0 0
        %1223 = vmatpush1.bf16.msra.mxu0 0
        %1224 = vmatprep.subr.bf16.mxu0 0
        %1225 = vmatpush1.bf16.msra.mxu0 0
        %1226 = vmatprep.mubr.bf16.mxu0 0
        %1227 = vmatmul.mubr.bf16.gmra.mrb[0].mxu0 %v1189
        %v1228 = vpop.f32.mrb[0].mxu0
        %v1229 = vadd.f32 0.0, %v1228
        %v1230 = vpop.f32.mrb[0].mxu0
        %v1231 = vpop.f32.mrb[0].mxu0
        %v1232 = vpop.f32.mrb[0].mxu0
        %1233 = vdwg.mxu0
        %v1234 = vpack.c.bf16 %v1229, %v1229
        %v1236 = vunpack.c.l.b16 %v1234
        %v1237 = vpack.c.b16 %v1236, %v1236
        %1238 = vrot.lane.b32.xlu0 %v1237, 32
        %v1239 = vpop.permute.xlu0 %1238
        %vm1241 = vcmask 519424
        %1242 = vst.msk [vmem:[#allocation4] sm:$0xf] %vm1241, %v1239
        %v1243 = vld [vmem:[#allocation4] sm:$0xf]
        %v1244 = vld [vmem:[#allocation22] sm:$0xf]
        %v1245 = vld [vmem:[#allocation22 + $0x4] sm:$0xf]
        %v1246 = vld [vmem:[#allocation22 + $0x8] sm:$0xf]
        %v1247 = vld [vmem:[#allocation22 + $0xc] sm:$0xf]
        %v1248 = vld [vmem:[#allocation22 + $0x10] sm:$0xf]
        %v1249 = vld [vmem:[#allocation22 + $0x14] sm:$0xf]
        %v1250 = vld [vmem:[#allocation22 + $0x18] sm:$0xf]
        %v1251 = vld [vmem:[#allocation22 + $0x1c] sm:$0xf]
        %v1252 = vld [vmem:[#allocation23] sm:$0x1]
        %v1254 = vlaneseq
        %v1255 = vshrl.u32 %v1254, 7
        %v1256 = vsub.s32 0, %v1255
        %v1257 = vrot.slane %v1252, %v1256
        %v1267 = vunpack.c.l.b16 %v1244
        %v1268 = vunpack.c.l.b16 %v1245
        %v1269 = vunpack.c.l.b16 %v1246
        %v1270 = vunpack.c.l.b16 %v1247
        %v1271 = vunpack.c.l.b16 %v1248
        %v1272 = vunpack.c.l.b16 %v1249
        %v1273 = vunpack.c.l.b16 %v1250
        %v1274 = vunpack.c.l.b16 %v1251
        %v1275 = vpack.c.b16 %v1268, %v1267
        %v1276 = vpack.c.b16 %v1270, %v1269
        %v1277 = vpack.c.b16 %v1272, %v1271
        %v1278 = vpack.c.b16 %v1274, %v1273
        %vm1283 = vcmask 523264
        %v1285 = vsel %vm1283, %v1243, 0
        %1287 = vmatprep.subr.bf16.mxu0 0
        %1288 = vmatpush1.bf16.msra.mxu0 %v1275
        %1289 = vmatprep.subr.bf16.mxu0 0
        %1290 = vmatpush1.bf16.msra.mxu0 %v1276
        %1291 = vmatprep.subr.bf16.mxu0 0
        %1292 = vmatpush1.bf16.msra.mxu0 %v1277
        %1293 = vmatprep.subr.bf16.mxu0 0
        %1294 = vmatpush1.bf16.msra.mxu0 %v1278
        %1295 = vmatprep.subr.bf16.mxu0 0
        %1296 = vmatpush1.bf16.msra.mxu0 0
        %1297 = vmatprep.subr.bf16.mxu0 0
        %1298 = vmatpush1.bf16.msra.mxu0 0
        %1299 = vmatprep.subr.bf16.mxu0 0
        %1300 = vmatpush1.bf16.msra.mxu0 0
        %1301 = vmatprep.subr.bf16.mxu0 0
        %1302 = vmatpush1.bf16.msra.mxu0 0
        %1303 = vmatprep.subr.bf16.mxu0 0
        %1304 = vmatpush1.bf16.msra.mxu0 0
        %1305 = vmatprep.subr.bf16.mxu0 0
        %1306 = vmatpush1.bf16.msra.mxu0 0
        %1307 = vmatprep.subr.bf16.mxu0 0
        %1308 = vmatpush1.bf16.msra.mxu0 0
        %1309 = vmatprep.subr.bf16.mxu0 0
        %1310 = vmatpush1.bf16.msra.mxu0 0
        %1311 = vmatprep.subr.bf16.mxu0 0
        %1312 = vmatpush1.bf16.msra.mxu0 0
        %1313 = vmatprep.subr.bf16.mxu0 0
        %1314 = vmatpush1.bf16.msra.mxu0 0
        %1315 = vmatprep.subr.bf16.mxu0 0
        %1316 = vmatpush1.bf16.msra.mxu0 0
        %1317 = vmatprep.subr.bf16.mxu0 0
        %1318 = vmatpush1.bf16.msra.mxu0 0
        %1319 = vmatprep.mubr.bf16.mxu0 0
        %1320 = vmatmul.mubr.bf16.gmra.mrb[0].mxu0 %v1285
        %v1321 = vpop.f32.mrb[0].mxu0
        %v1322 = vadd.f32 %v1257, %v1321
        %v1323 = vpop.f32.mrb[0].mxu0
        %v1324 = vpop.f32.mrb[0].mxu0
        %v1325 = vpop.f32.mrb[0].mxu0
        %1326 = vdwg.mxu0
        %v1327 = vadd.f32 %v1322, %v923
        %v1328 = vld [vmem:[#allocation25] sm:$0x1]
        %v1329 = vld [vmem:[#allocation26] sm:$0x1]
        %v1330 = vsel %vm948, %v1327, 0.0
        %1331 = vadd.xlane.f32.xlu0 %v1330
        %v1332 = vpop.xlane.xlu0 %1331
        %v1333 = vrcp.pop 32.0
        %v1334 = vmul.f32 %v1332, %v1333
        %v1335 = vsub.f32 %v1327, %v1334
        %v1336 = vmul.f32 %v1335, %v1335
        %v1337 = vsel %vm948, %v1336, 0.0
        %1338 = vadd.xlane.f32.xlu0 %v1337
        %v1339 = vpop.xlane.xlu0 %1338
        %v1340 = vmul.f32 %v1339, %v1333
        %v1341 = vadd.f32 %v1340, 1e-05
        %v1342 = vrsqrt.pop %v1341
        %v1343 = vmul.f32 %v1335, %v1342
        %v1345 = vlaneseq
        %v1346 = vshrl.u32 %v1345, 7
        %v1347 = vsub.s32 0, %v1346
        %v1348 = vrot.slane %v1328, %v1347
        %v1350 = vmul.f32 %v1343, %v1348
        %v1352 = vlaneseq
        %v1353 = vshrl.u32 %v1352, 7
        %v1354 = vsub.s32 0, %v1353
        %v1355 = vrot.slane %v1329, %v1354
        %v1357 = vadd.f32 %v1350, %v1355
        %1358 = vst.msk [vmem:[%s770] sm:$0xff] %vm948, %v1357
        %s1359 = sand.u32 %s385, 1
        %s1360 = scalar_lea.sflag [#allocation7], %s1359
        %s1361 = sand.u32 %s385, 1
        %s1362 = smul.addr %s1361, 8
        %s1363 = scalar_lea.vmem [#allocation28], %s1362
        %s1364 = sand.u32 %s413, 1
        %s1365 = scalar_lea.sflag [#allocation30], %s1364
        %s1366 = sand.u32 %s413, 1
        %s1367 = smul.addr %s1366, 8
        %s1368 = scalar_lea.vmem [#allocation29], %s1367
        // Predicated region
        $region137: #{tpu_custom_call.1} parent=75 // pred_check
          %p1369 = pneg %p395
        $region138: #{tpu_custom_call.1} parent=75 // pred_check_branch
          %1371 = sbr.rel (%p1369) target = $region140
        $region139: #{tpu_custom_call.1} parent=75 // pred_region
          %s1373 = ssub.s32 128, 128
          %1374 = vsyncadd %s1360, %s1373
          %s1375 = sadd.s32 %s52, %s51
          %s1376 = smul.addr %s1375, 128
          %s1377 = scalar_lea.hbm %s14, %s1376
          %s1379 = sshll.u32 %s1363, 4
          %s1380 = int_to_ptr.vmem [resolvable:$true] %s1379
          %1382 = dma.vmem_to_hbm [thread:$0]  %s1380, 128, %s1377, %s1360
        $region140: #{tpu_custom_call.1} parent=75 // pred_fallthru
          _
        // Predicated region
        $region141: #{tpu_custom_call.1} parent=75 // pred_check
          %p1383 = pneg %p423
        $region142: #{tpu_custom_call.1} parent=75 // pred_check_branch
          %1385 = sbr.rel (%p1383) target = $region144
        $region143: #{tpu_custom_call.1} parent=75 // pred_region
          %s1387 = ssub.s32 128, 128
          %1388 = vsyncadd %s1365, %s1387
          %s1389 = sadd.s32 %s52, %s51
          %s1390 = smul.addr %s1389, 64
          %s1391 = scalar_lea.hbm %s15, %s1390
          %s1392 = sshll.u32 %s1368, 4
          %s1393 = int_to_ptr.vmem [resolvable:$true] %s1392
          %1398 = dma.vmem_to_hbm [thread:$0]  %s1393, 128, %s1391, %s1365, 64, 128, 4
        $region144: #{tpu_custom_call.1} parent=75 // pred_fallthru
          _
      $region76: #{tpu_custom_call.1} parent=5 // pred_fallthru
        _
      %p1399 = scmp.le.s32.totalorder 2, %s42
      // Predicated region
      $region145: #{tpu_custom_call.1} parent=5 // pred_check
        %p1400 = pneg %p1399
      $region146: #{tpu_custom_call.1} parent=5 // pred_check_branch
        %1402 = sbr.rel (%p1400) target = $region148
      $region147: #{tpu_custom_call.1} parent=5 // pred_region
        %s1403 = ssub.s32 %s42, 2
        // Predicated region
        $region149: #{tpu_custom_call.1} parent=147 // pred_check
          %p1404 = pneg %p401
        $region150: #{tpu_custom_call.1} parent=147 // pred_check_branch
          %1406 = sbr.rel (%p1404) target = $region152
        $region151: #{tpu_custom_call.1} parent=147 // pred_region
          %s1407 = sand.u32 %s386, 1
          %s1408 = scalar_lea.sflag [#allocation7], %s1407
          %s1409 = sand.u32 %s386, 1
          %s1410 = smul.addr %s1409, 8
          %s1411 = scalar_lea.vmem [#allocation28], %s1410
          %1412 = dma.done %s1408, 128
        $region152: #{tpu_custom_call.1} parent=147 // pred_fallthru
          _
        // Predicated region
        $region153: #{tpu_custom_call.1} parent=147 // pred_check
          %p1413 = pneg %p429
        $region154: #{tpu_custom_call.1} parent=147 // pred_check_branch
          %1415 = sbr.rel (%p1413) target = $region156
        $region155: #{tpu_custom_call.1} parent=147 // pred_region
          %s1416 = sand.u32 %s414, 1
          %s1417 = scalar_lea.sflag [#allocation30], %s1416
          %s1418 = sand.u32 %s414, 1
          %s1419 = smul.addr %s1418, 8
          %s1420 = scalar_lea.vmem [#allocation29], %s1419
          %1421 = dma.done %s1417, 128
        $region156: #{tpu_custom_call.1} parent=147 // pred_fallthru
          _
      $region148: #{tpu_custom_call.1} parent=5 // pred_fallthru
        _
    $region6: #{tpu_custom_call.1} parent=1 // loop_footer
      %s46 = sadd.s32 1, %s42
    $region7: #{tpu_custom_call.1} parent=1 // loop_footer_branch
      %41 = sbr.rel target = $region3
    $region8: #{tpu_custom_call.1} parent=1 // loop_exit
      _
    %1422 = vsyncpa [#allocation6], 1
    %s1423 = scalar_lea.sflag [#allocation6], 1
    %1424 = vsyncpa %s1423, 1
    %1425 = vsyncpa [#allocation9], 1
    %s1426 = scalar_lea.sflag [#allocation9], 1
    %1427 = vsyncpa %s1426, 1
    %1428 = vsyncpa [#allocation12], 1
    %s1429 = scalar_lea.sflag [#allocation12], 1
    %1430 = vsyncpa %s1429, 1
    %1431 = vsyncpa [#allocation15], 1
    %1432 = vsyncpa [#allocation18], 1
    %1433 = vsyncpa [#allocation21], 1
    %1434 = vsyncpa [#allocation24], 1
    %1435 = vsyncpa [#allocation27], 1
    %1436 = vsyncpa [#allocation7], 1
    %s1437 = scalar_lea.sflag [#allocation7], 1
    %1438 = vsyncpa %s1437, 1
    %1439 = vsyncpa [#allocation30], 1
    %s1440 = scalar_lea.sflag [#allocation30], 1
    %1441 = vsyncpa %s1440, 1

</llo_original>
